<compile_context>
chip_gen: v7x
topology: tpu7x:2x2x1
jax: 0.10.0
libtpu: 0.0.40
codegen_flags: <defaults>
</compile_context>

<pallas_src>
import functools

import numpy as np
import jax
import jax.numpy as jnp
from jax.experimental import pallas as pl
from jax.experimental.pallas import tpu as pltpu


# ----------------------------------------------------------------------------
# Fused Encoding_Block kernel (one grid step == one image)
# ----------------------------------------------------------------------------
def _encoding_block_kernel(alpha_ref, xpad_ref, B1_ref, b1_ref, B4_ref, b4_ref,
                           B5_ref, b5_ref, fe_ref, down_ref, pad1_ref, pad4_ref,
                           *, H, W, F, Cin):
    WF = W * F
    H2 = H // 2
    W2 = W // 2
    alpha = alpha_ref[0]

    # Only the two H-padding rows need zeros; interior rows are fully
    # overwritten below.  Two single-row vst's per buffer, per image.
    zrow = jnp.zeros((1, WF), jnp.float32)
    pad1_ref[0:1, :] = zrow
    pad1_ref[H + 1:H + 2, :] = zrow
    pad4_ref[0:1, :] = zrow
    pad4_ref[H + 1:H + 2, :] = zrow

    # ---- conv1 (3x3, pad 1) + PReLU  ->  pad1 interior ----------------------
    x = xpad_ref[0]                                      # (H+2, W*Cin) f32
    acc = None
    for kh in range(3):                                  # unrolled, 3 MXU dots
        win = x[kh:kh + H, :].astype(jnp.bfloat16)
        d = jnp.dot(win, B1_ref[kh], preferred_element_type=jnp.float32)
        acc = d if acc is None else acc + d
    acc = acc + b1_ref[...]                              # (1, W*F) broadcast
    pad1_ref[1:1 + H, :] = jnp.where(acc >= 0.0, acc, alpha * acc)

    # ---- conv4 (3x3, pad 1), no activation  ->  f_e + pad4 interior ----------
    acc = None
    for kh in range(3):
        win = pad1_ref[kh:kh + H, :].astype(jnp.bfloat16)
        d = jnp.dot(win, B4_ref[kh], preferred_element_type=jnp.float32)
        acc = d if acc is None else acc + d
    f_e = acc + b4_ref[...]
    fe_ref[0] = f_e                                      # lane-dense (H, W*F) store
    pad4_ref[1:1 + H, :] = f_e

    # ---- conv5 (3x3, stride 2, pad 1) + PReLU  ->  down ----------------------
    acc = None
    for kh in range(3):
        # rows kh, kh+2, ..., kh+2*(H2-1): strided sublane read handles the
        # H-direction stride; the stride-2 banded B5 handles the W-direction.
        win = pad4_ref[pl.ds(kh, H2, stride=2), :].astype(jnp.bfloat16)
        d = jnp.dot(win, B5_ref[kh], preferred_element_type=jnp.float32)
        acc = d if acc is None else acc + d
    acc = acc + b5_ref[...]
    down_ref[0] = jnp.where(acc >= 0.0, acc, alpha * acc)


# ----------------------------------------------------------------------------
# Host-side weight preparation (done once, outside the hot path)
# ----------------------------------------------------------------------------
def _band_matrix(w_pt, w_in, w_out, stride):
    """Turn a PyTorch-layout conv weight (Cout, Cin, 3, 3) into per-kh banded
    matrices of shape (3, w_in*Cin, w_out*Cout) implementing the kw taps,
    channel contraction, W-stride and zero W-padding in one lane-dim matmul."""
    w_np = np.asarray(w_pt, dtype=np.float32)            # (Cout, Cin, KH, KW)
    cout, cin, KH, KW = w_np.shape
    pad = KW // 2
    mats = np.zeros((KH, w_in * cin, w_out * cout), np.float32)
    for kh in range(KH):
        for w in range(w_out):
            for kw in range(KW):
                wi = stride * w + kw - pad
                if 0 <= wi < w_in:
                    mats[kh, wi * cin:(wi + 1) * cin,
                         w * cout:(w + 1) * cout] = w_np[:, :, kh, kw].T
    return jnp.asarray(mats, dtype=jnp.bfloat16)          # bf16 MXU operands


def prepare_encoding_block(params, W):
    F = params["conv1_w"].shape[0]
    W2 = W // 2
    return dict(
        B1=_band_matrix(params["conv1_w"], W, W, 1),      # (3, W*Cin, W*F)
        B4=_band_matrix(params["conv4_w"], W, W, 1),      # (3, W*F,  W*F)
        B5=_band_matrix(params["conv5_w"], W, W2, 2),     # (3, W*F,  W2*F)
        b1_row=jnp.tile(params["conv1_b"], W).reshape(1, W * F).astype(jnp.float32),
        b4_row=jnp.tile(params["conv4_b"], W).reshape(1, W * F).astype(jnp.float32),
        b5_row=jnp.tile(params["conv5_b"], W2).reshape(1, W2 * F).astype(jnp.float32),
        alpha=jnp.asarray(params["alpha"], jnp.float32).reshape(1),
    )


# ----------------------------------------------------------------------------
# Forward pass (accepts / returns PyTorch-style NCHW)
# ----------------------------------------------------------------------------
def encoding_block_forward(prep, x_nchw):
    N, Cin, H, W = x_nchw.shape
    WF = prep["b1_row"].shape[-1]
    F = WF // W
    H2, W2 = H // 2, W // 2
    Hp = H + 2

    # NCHW -> (N, H+2, W*Cin): channel-fastest lane layout, H zero-padded by 1.
    x = jnp.transpose(x_nchw, (0, 2, 3, 1)).reshape(N, H, W * Cin)
    xpad = jnp.pad(x, ((0, 0), (1, 1), (0, 0)))

    kernel = functools.partial(_encoding_block_kernel, H=H, W=W, F=F, Cin=Cin)

    flops = 2 * N * 3 * (H * (W * Cin) * WF + H * WF * WF + H2 * WF * (W2 * F))
    bytes_accessed = (xpad.size * 4
                      + 2 * (prep["B1"].size + prep["B4"].size + prep["B5"].size)
                      + 4 * (N * H * WF + N * H2 * W2 * F))

    fe_flat, down_flat = pl.pallas_call(
        kernel,
        out_shape=(jax.ShapeDtypeStruct((N, H, WF), jnp.float32),
                   jax.ShapeDtypeStruct((N, H2, W2 * F), jnp.float32)),
        grid_spec=pltpu.PrefetchScalarGridSpec(
            num_scalar_prefetch=0,
            grid=(N,),
            in_specs=[
                pl.BlockSpec(memory_space=pltpu.MemorySpace.SMEM),       # alpha
                pl.BlockSpec((1, Hp, W * Cin), lambda n: (n, 0, 0)),     # xpad
                pl.BlockSpec((3, W * Cin, WF), lambda n: (0, 0, 0)),     # B1
                pl.BlockSpec((1, WF), lambda n: (0, 0)),                 # b1
                pl.BlockSpec((3, WF, WF), lambda n: (0, 0, 0)),          # B4
                pl.BlockSpec((1, WF), lambda n: (0, 0)),                 # b4
                pl.BlockSpec((3, WF, W2 * F), lambda n: (0, 0, 0)),      # B5
                pl.BlockSpec((1, W2 * F), lambda n: (0, 0)),             # b5
            ],
            out_specs=[
                pl.BlockSpec((1, H, WF), lambda n: (n, 0, 0)),           # f_e
                pl.BlockSpec((1, H2, W2 * F), lambda n: (n, 0, 0)),      # down
            ],
            scratch_shapes=[
                pltpu.VMEM((Hp, WF), jnp.float32),    # padded act(conv1)
                pltpu.VMEM((Hp, WF), jnp.float32),    # padded conv4 output (f_e)
            ],
        ),
        compiler_params=pltpu.CompilerParams(dimension_semantics=("parallel",)),
        cost_estimate=pl.CostEstimate(flops=int(flops), transcendentals=0,
                                      bytes_accessed=int(bytes_accessed)),
    )(prep["alpha"], xpad, prep["B1"], prep["b1_row"], prep["B4"], prep["b4_row"],
      prep["B5"], prep["b5_row"])

    f_e = fe_flat.reshape(N, H, W, F).transpose(0, 3, 1, 2)       # -> NCHW
    down = down_flat.reshape(N, H2, W2, F).transpose(0, 3, 1, 2)  # -> NCHW
    return f_e, down


# ----------------------------------------------------------------------------
# Deterministic parameter init (xavier-normal weights, PReLU alpha = 0.25)
# ----------------------------------------------------------------------------
def _xavier_normal(key, shape):
    fan_out = shape[0] * shape[2] * shape[3]
    fan_in = shape[1] * shape[2] * shape[3]
    std = (2.0 / (fan_in + fan_out)) ** 0.5
    return std * jax.random.normal(key, shape, dtype=jnp.float32)


def init_encoding_block_params(key, c_in, n_feat):
    ks = jax.random.split(key, 6)

    def conv(kw_, kb_, co, ci, k=3):
        w = _xavier_normal(kw_, (co, ci, k, k))
        b = 0.01 * jax.random.normal(kb_, (co,), dtype=jnp.float32)
        return w, b

    c1w, c1b = conv(ks[0], ks[1], n_feat, c_in)
    c4w, c4b = conv(ks[2], ks[3], n_feat, n_feat)
    c5w, c5b = conv(ks[4], ks[5], n_feat, n_feat)
    return dict(conv1_w=c1w, conv1_b=c1b, conv4_w=c4w, conv4_b=c4b,
                conv5_w=c5w, conv5_b=c5b, alpha=jnp.float32(0.25))


# ----------------------------------------------------------------------------
if __name__ == "__main__":
    c_in, n_feat = 4, 8
    N, H, W = 2, 16, 16

    key = jax.random.PRNGKey(0)
    k_x, k_p = jax.random.split(key)
    x = jax.random.normal(k_x, (N, c_in, H, W), dtype=jnp.float32)   # NCHW input

    raw_params = init_encoding_block_params(k_p, c_in, n_feat)
    prep = prepare_encoding_block(raw_params, W=W)

    fwd = jax.jit(encoding_block_forward)
    f_e, down = fwd(prep, x)
    f_e, down = jax.block_until_ready((f_e, down))

    assert f_e.shape == (N, n_feat, H, W), f_e.shape
    assert down.shape == (N, n_feat, H // 2, W // 2), down.shape
    assert bool(jnp.all(jnp.isfinite(f_e))) and bool(jnp.all(jnp.isfinite(down)))
    print("KERNEL_OK")
</pallas_src>

<mosaic_0001>
module attributes {stable_mosaic.version = 11 : i64} {
  func.func @_encoding_block_kernel(%arg0: i32, %arg1: memref<1xf32, #tpu.memory_space<smem>>, %arg2: memref<1x18x64xf32, #tpu.memory_space<vmem>>, %arg3: memref<3x64x128xbf16, #tpu.memory_space<vmem>>, %arg4: memref<1x128xf32, #tpu.memory_space<vmem>>, %arg5: memref<3x128x128xbf16, #tpu.memory_space<vmem>>, %arg6: memref<1x128xf32, #tpu.memory_space<vmem>>, %arg7: memref<3x128x64xbf16, #tpu.memory_space<vmem>>, %arg8: memref<1x64xf32, #tpu.memory_space<vmem>>, %arg9: memref<1x16x128xf32, #tpu.memory_space<vmem>>, %arg10: memref<1x8x64xf32, #tpu.memory_space<vmem>>, %arg11: memref<18x128xf32, #tpu.memory_space<vmem>>, %arg12: memref<18x128xf32, #tpu.memory_space<vmem>>) attributes {dimension_semantics = [#tpu.dimension_semantics<parallel>], iteration_bounds = array<i64: 2>, scalar_prefetch = 0 : i64, scratch_operands = 2 : i64, tpu.core_type = #tpu.core_type<tc>, window_params = [{transform_indices = @transform_0, window_bounds = array<i64: 1>}, {transform_indices = @transform_1, window_bounds = array<i64: 1, 18, 64>}, {pipeline_mode = #tpu.pipeline_mode<synchronous>, transform_indices = @transform_2, window_bounds = array<i64: 3, 64, 128>}, {pipeline_mode = #tpu.pipeline_mode<synchronous>, transform_indices = @transform_3, window_bounds = array<i64: 1, 128>}, {pipeline_mode = #tpu.pipeline_mode<synchronous>, transform_indices = @transform_4, window_bounds = array<i64: 3, 128, 128>}, {pipeline_mode = #tpu.pipeline_mode<synchronous>, transform_indices = @transform_5, window_bounds = array<i64: 1, 128>}, {pipeline_mode = #tpu.pipeline_mode<synchronous>, transform_indices = @transform_6, window_bounds = array<i64: 3, 128, 64>}, {pipeline_mode = #tpu.pipeline_mode<synchronous>, transform_indices = @transform_7, window_bounds = array<i64: 1, 64>}, {transform_indices = @transform_8, window_bounds = array<i64: 1, 16, 128>}, {transform_indices = @transform_9, window_bounds = array<i64: 1, 8, 64>}]} {
    %c0 = arith.constant 0 : index
    %0 = memref.load %arg1[%c0] : memref<1xf32, #tpu.memory_space<smem>>
    %cst = arith.constant 0.000000e+00 : f32
    %1 = vector.broadcast %cst : f32 to vector<1x128xf32>
    %c0_0 = arith.constant 0 : index
    %c0_1 = arith.constant 0 : index
    %2 = vector.load %arg11[%c0_0, %c0_1] : memref<18x128xf32, #tpu.memory_space<vmem>>, vector<1x128xf32>
    tpu.vector_store %arg11[%c0_0, %c0_1], %1 {strides = array<i32>} : memref<18x128xf32, #tpu.memory_space<vmem>>, vector<1x128xf32>,
    %c17 = arith.constant 17 : index
    %c0_2 = arith.constant 0 : index
    %3 = vector.load %arg11[%c17, %c0_2] : memref<18x128xf32, #tpu.memory_space<vmem>>, vector<1x128xf32>
    tpu.vector_store %arg11[%c17, %c0_2], %1 {strides = array<i32>} : memref<18x128xf32, #tpu.memory_space<vmem>>, vector<1x128xf32>,
    %c0_3 = arith.constant 0 : index
    %c0_4 = arith.constant 0 : index
    %4 = vector.load %arg12[%c0_3, %c0_4] : memref<18x128xf32, #tpu.memory_space<vmem>>, vector<1x128xf32>
    tpu.vector_store %arg12[%c0_3, %c0_4], %1 {strides = array<i32>} : memref<18x128xf32, #tpu.memory_space<vmem>>, vector<1x128xf32>,
    %c17_5 = arith.constant 17 : index
    %c0_6 = arith.constant 0 : index
    %5 = vector.load %arg12[%c17_5, %c0_6] : memref<18x128xf32, #tpu.memory_space<vmem>>, vector<1x128xf32>
    tpu.vector_store %arg12[%c17_5, %c0_6], %1 {strides = array<i32>} : memref<18x128xf32, #tpu.memory_space<vmem>>, vector<1x128xf32>,
    %c0_7 = arith.constant 0 : index
    %c0_8 = arith.constant 0 : index
    %c0_9 = arith.constant 0 : index
    %6 = vector.load %arg2[%c0_7, %c0_8, %c0_9] : memref<1x18x64xf32, #tpu.memory_space<vmem>>, vector<1x18x64xf32>
    %7 = vector.shape_cast %6 : vector<1x18x64xf32> to vector<18x64xf32>
    %8 = vector.extract_strided_slice %7 {offsets = [0, 0], sizes = [16, 64], strides = [1, 1]} : vector<18x64xf32> to vector<16x64xf32>
    %9 = arith.truncf %8 : vector<16x64xf32> to vector<16x64xbf16>
    %c0_10 = arith.constant 0 : index
    %c0_11 = arith.constant 0 : index
    %c0_12 = arith.constant 0 : index
    %10 = vector.load %arg3[%c0_10, %c0_11, %c0_12] : memref<3x64x128xbf16, #tpu.memory_space<vmem>>, vector<1x64x128xbf16>
    %11 = vector.shape_cast %10 : vector<1x64x128xbf16> to vector<64x128xbf16>
    %cst_13 = arith.constant dense<0.000000e+00> : vector<16x128xf32>
    %12 = tpu.matmul %9, %11, %cst_13 {dimension_numbers = #tpu.dot_dimension_numbers<[1], [0], [0], [1], [0, 0, 1, 1], [], []>} : vector<16x64xbf16>, vector<64x128xbf16>, vector<16x128xf32> -> vector<16x128xf32>
    %13 = vector.extract_strided_slice %7 {offsets = [1, 0], sizes = [16, 64], strides = [1, 1]} : vector<18x64xf32> to vector<16x64xf32>
    %14 = arith.truncf %13 : vector<16x64xf32> to vector<16x64xbf16>
    %c1 = arith.constant 1 : index
    %c0_14 = arith.constant 0 : index
    %c0_15 = arith.constant 0 : index
    %15 = vector.load %arg3[%c1, %c0_14, %c0_15] : memref<3x64x128xbf16, #tpu.memory_space<vmem>>, vector<1x64x128xbf16>
    %16 = vector.shape_cast %15 : vector<1x64x128xbf16> to vector<64x128xbf16>
    %cst_16 = arith.constant dense<0.000000e+00> : vector<16x128xf32>
    %17 = tpu.matmul %14, %16, %cst_16 {dimension_numbers = #tpu.dot_dimension_numbers<[1], [0], [0], [1], [0, 0, 1, 1], [], []>} : vector<16x64xbf16>, vector<64x128xbf16>, vector<16x128xf32> -> vector<16x128xf32>
    %18 = arith.addf %12, %17 : vector<16x128xf32>
    %19 = vector.extract_strided_slice %7 {offsets = [2, 0], sizes = [16, 64], strides = [1, 1]} : vector<18x64xf32> to vector<16x64xf32>
    %20 = arith.truncf %19 : vector<16x64xf32> to vector<16x64xbf16>
    %c2 = arith.constant 2 : index
    %c0_17 = arith.constant 0 : index
    %c0_18 = arith.constant 0 : index
    %21 = vector.load %arg3[%c2, %c0_17, %c0_18] : memref<3x64x128xbf16, #tpu.memory_space<vmem>>, vector<1x64x128xbf16>
    %22 = vector.shape_cast %21 : vector<1x64x128xbf16> to vector<64x128xbf16>
    %cst_19 = arith.constant dense<0.000000e+00> : vector<16x128xf32>
    %23 = tpu.matmul %20, %22, %cst_19 {dimension_numbers = #tpu.dot_dimension_numbers<[1], [0], [0], [1], [0, 0, 1, 1], [], []>} : vector<16x64xbf16>, vector<64x128xbf16>, vector<16x128xf32> -> vector<16x128xf32>
    %24 = arith.addf %18, %23 : vector<16x128xf32>
    %c0_20 = arith.constant 0 : index
    %c0_21 = arith.constant 0 : index
    %25 = vector.load %arg4[%c0_20, %c0_21] : memref<1x128xf32, #tpu.memory_space<vmem>>, vector<1x128xf32>
    %26 = vector.broadcast %25 : vector<1x128xf32> to vector<16x128xf32>
    %27 = arith.addf %24, %26 : vector<16x128xf32>
    %cst_22 = arith.constant 0.000000e+00 : f32
    %28 = vector.broadcast %cst_22 : f32 to vector<16x128xf32>
    %29 = arith.cmpf oge, %27, %28 : vector<16x128xf32>
    %30 = vector.broadcast %0 : f32 to vector<16x128xf32>
    %31 = arith.mulf %30, %27 : vector<16x128xf32>
    %32 = arith.select %29, %27, %31 : vector<16x128xi1>, vector<16x128xf32>
    %c1_23 = arith.constant 1 : index
    %c0_24 = arith.constant 0 : index
    %33 = vector.load %arg11[%c1_23, %c0_24] : memref<18x128xf32, #tpu.memory_space<vmem>>, vector<16x128xf32>
    tpu.vector_store %arg11[%c1_23, %c0_24], %32 {strides = array<i32>} : memref<18x128xf32, #tpu.memory_space<vmem>>, vector<16x128xf32>,
    %c0_25 = arith.constant 0 : index
    %c0_26 = arith.constant 0 : index
    %34 = vector.load %arg11[%c0_25, %c0_26] : memref<18x128xf32, #tpu.memory_space<vmem>>, vector<16x128xf32>
    %35 = arith.truncf %34 : vector<16x128xf32> to vector<16x128xbf16>
    %c0_27 = arith.constant 0 : index
    %c0_28 = arith.constant 0 : index
    %c0_29 = arith.constant 0 : index
    %36 = vector.load %arg5[%c0_27, %c0_28, %c0_29] : memref<3x128x128xbf16, #tpu.memory_space<vmem>>, vector<1x128x128xbf16>
    %37 = vector.shape_cast %36 : vector<1x128x128xbf16> to vector<128x128xbf16>
    %cst_30 = arith.constant dense<0.000000e+00> : vector<16x128xf32>
    %38 = tpu.matmul %35, %37, %cst_30 {dimension_numbers = #tpu.dot_dimension_numbers<[1], [0], [0], [1], [0, 0, 1, 1], [], []>} : vector<16x128xbf16>, vector<128x128xbf16>, vector<16x128xf32> -> vector<16x128xf32>
    %c1_31 = arith.constant 1 : index
    %c0_32 = arith.constant 0 : index
    %39 = vector.load %arg11[%c1_31, %c0_32] : memref<18x128xf32, #tpu.memory_space<vmem>>, vector<16x128xf32>
    %40 = arith.truncf %39 : vector<16x128xf32> to vector<16x128xbf16>
    %c1_33 = arith.constant 1 : index
    %c0_34 = arith.constant 0 : index
    %c0_35 = arith.constant 0 : index
    %41 = vector.load %arg5[%c1_33, %c0_34, %c0_35] : memref<3x128x128xbf16, #tpu.memory_space<vmem>>, vector<1x128x128xbf16>
    %42 = vector.shape_cast %41 : vector<1x128x128xbf16> to vector<128x128xbf16>
    %cst_36 = arith.constant dense<0.000000e+00> : vector<16x128xf32>
    %43 = tpu.matmul %40, %42, %cst_36 {dimension_numbers = #tpu.dot_dimension_numbers<[1], [0], [0], [1], [0, 0, 1, 1], [], []>} : vector<16x128xbf16>, vector<128x128xbf16>, vector<16x128xf32> -> vector<16x128xf32>
    %44 = arith.addf %38, %43 : vector<16x128xf32>
    %c2_37 = arith.constant 2 : index
    %c0_38 = arith.constant 0 : index
    %45 = vector.load %arg11[%c2_37, %c0_38] : memref<18x128xf32, #tpu.memory_space<vmem>>, vector<16x128xf32>
    %46 = arith.truncf %45 : vector<16x128xf32> to vector<16x128xbf16>
    %c2_39 = arith.constant 2 : index
    %c0_40 = arith.constant 0 : index
    %c0_41 = arith.constant 0 : index
    %47 = vector.load %arg5[%c2_39, %c0_40, %c0_41] : memref<3x128x128xbf16, #tpu.memory_space<vmem>>, vector<1x128x128xbf16>
    %48 = vector.shape_cast %47 : vector<1x128x128xbf16> to vector<128x128xbf16>
    %cst_42 = arith.constant dense<0.000000e+00> : vector<16x128xf32>
    %49 = tpu.matmul %46, %48, %cst_42 {dimension_numbers = #tpu.dot_dimension_numbers<[1], [0], [0], [1], [0, 0, 1, 1], [], []>} : vector<16x128xbf16>, vector<128x128xbf16>, vector<16x128xf32> -> vector<16x128xf32>
    %50 = arith.addf %44, %49 : vector<16x128xf32>
    %c0_43 = arith.constant 0 : index
    %c0_44 = arith.constant 0 : index
    %51 = vector.load %arg6[%c0_43, %c0_44] : memref<1x128xf32, #tpu.memory_space<vmem>>, vector<1x128xf32>
    %52 = vector.broadcast %51 : vector<1x128xf32> to vector<16x128xf32>
    %53 = arith.addf %50, %52 : vector<16x128xf32>
    %c0_45 = arith.constant 0 : index
    %c0_46 = arith.constant 0 : index
    %c0_47 = arith.constant 0 : index
    %54 = vector.load %arg9[%c0_45, %c0_46, %c0_47] : memref<1x16x128xf32, #tpu.memory_space<vmem>>, vector<1x16x128xf32>
    %55 = vector.shape_cast %54 : vector<1x16x128xf32> to vector<16x128xf32>
    %56 = vector.shape_cast %53 : vector<16x128xf32> to vector<1x16x128xf32>
    tpu.vector_store %arg9[%c0_45, %c0_46, %c0_47], %56 {strides = array<i32>} : memref<1x16x128xf32, #tpu.memory_space<vmem>>, vector<1x16x128xf32>,
    %c1_48 = arith.constant 1 : index
    %c0_49 = arith.constant 0 : index
    %57 = vector.load %arg12[%c1_48, %c0_49] : memref<18x128xf32, #tpu.memory_space<vmem>>, vector<16x128xf32>
    tpu.vector_store %arg12[%c1_48, %c0_49], %53 {strides = array<i32>} : memref<18x128xf32, #tpu.memory_space<vmem>>, vector<16x128xf32>,
    %c0_50 = arith.constant 0 : index
    %c0_51 = arith.constant 0 : index
    %58 = tpu.strided_load %arg12[%c0_50, %c0_51] {strides = array<i32: 2, 1>} : memref<18x128xf32, #tpu.memory_space<vmem>>, vector<8x128xf32>
    %59 = arith.truncf %58 : vector<8x128xf32> to vector<8x128xbf16>
    %c0_52 = arith.constant 0 : index
    %c0_53 = arith.constant 0 : index
    %c0_54 = arith.constant 0 : index
    %60 = vector.load %arg7[%c0_52, %c0_53, %c0_54] : memref<3x128x64xbf16, #tpu.memory_space<vmem>>, vector<1x128x64xbf16>
    %61 = vector.shape_cast %60 : vector<1x128x64xbf16> to vector<128x64xbf16>
    %cst_55 = arith.constant dense<0.000000e+00> : vector<8x64xf32>
    %62 = tpu.matmul %59, %61, %cst_55 {dimension_numbers = #tpu.dot_dimension_numbers<[1], [0], [0], [1], [0, 0, 1, 1], [], []>} : vector<8x128xbf16>, vector<128x64xbf16>, vector<8x64xf32> -> vector<8x64xf32>
    %c1_56 = arith.constant 1 : index
    %c0_57 = arith.constant 0 : index
    %63 = tpu.strided_load %arg12[%c1_56, %c0_57] {strides = array<i32: 2, 1>} : memref<18x128xf32, #tpu.memory_space<vmem>>, vector<8x128xf32>
    %64 = arith.truncf %63 : vector<8x128xf32> to vector<8x128xbf16>
    %c1_58 = arith.constant 1 : index
    %c0_59 = arith.constant 0 : index
    %c0_60 = arith.constant 0 : index
    %65 = vector.load %arg7[%c1_58, %c0_59, %c0_60] : memref<3x128x64xbf16, #tpu.memory_space<vmem>>, vector<1x128x64xbf16>
    %66 = vector.shape_cast %65 : vector<1x128x64xbf16> to vector<128x64xbf16>
    %cst_61 = arith.constant dense<0.000000e+00> : vector<8x64xf32>
    %67 = tpu.matmul %64, %66, %cst_61 {dimension_numbers = #tpu.dot_dimension_numbers<[1], [0], [0], [1], [0, 0, 1, 1], [], []>} : vector<8x128xbf16>, vector<128x64xbf16>, vector<8x64xf32> -> vector<8x64xf32>
    %68 = arith.addf %62, %67 : vector<8x64xf32>
    %c2_62 = arith.constant 2 : index
    %c0_63 = arith.constant 0 : index
    %69 = tpu.strided_load %arg12[%c2_62, %c0_63] {strides = array<i32: 2, 1>} : memref<18x128xf32, #tpu.memory_space<vmem>>, vector<8x128xf32>
    %70 = arith.truncf %69 : vector<8x128xf32> to vector<8x128xbf16>
    %c2_64 = arith.constant 2 : index
    %c0_65 = arith.constant 0 : index
    %c0_66 = arith.constant 0 : index
    %71 = vector.load %arg7[%c2_64, %c0_65, %c0_66] : memref<3x128x64xbf16, #tpu.memory_space<vmem>>, vector<1x128x64xbf16>
    %72 = vector.shape_cast %71 : vector<1x128x64xbf16> to vector<128x64xbf16>
    %cst_67 = arith.constant dense<0.000000e+00> : vector<8x64xf32>
    %73 = tpu.matmul %70, %72, %cst_67 {dimension_numbers = #tpu.dot_dimension_numbers<[1], [0], [0], [1], [0, 0, 1, 1], [], []>} : vector<8x128xbf16>, vector<128x64xbf16>, vector<8x64xf32> -> vector<8x64xf32>
    %74 = arith.addf %68, %73 : vector<8x64xf32>
    %c0_68 = arith.constant 0 : index
    %c0_69 = arith.constant 0 : index
    %75 = vector.load %arg8[%c0_68, %c0_69] : memref<1x64xf32, #tpu.memory_space<vmem>>, vector<1x64xf32>
    %76 = vector.broadcast %75 : vector<1x64xf32> to vector<8x64xf32>
    %77 = arith.addf %74, %76 : vector<8x64xf32>
    %cst_70 = arith.constant 0.000000e+00 : f32
    %78 = vector.broadcast %cst_70 : f32 to vector<8x64xf32>
    %79 = arith.cmpf oge, %77, %78 : vector<8x64xf32>
    %80 = vector.broadcast %0 : f32 to vector<8x64xf32>
    %81 = arith.mulf %80, %77 : vector<8x64xf32>
    %82 = arith.select %79, %77, %81 : vector<8x64xi1>, vector<8x64xf32>
    %c0_71 = arith.constant 0 : index
    %c0_72 = arith.constant 0 : index
    %c0_73 = arith.constant 0 : index
    %83 = vector.load %arg10[%c0_71, %c0_72, %c0_73] : memref<1x8x64xf32, #tpu.memory_space<vmem>>, vector<1x8x64xf32>
    %84 = vector.shape_cast %83 : vector<1x8x64xf32> to vector<8x64xf32>
    %85 = vector.shape_cast %82 : vector<8x64xf32> to vector<1x8x64xf32>
    tpu.vector_store %arg10[%c0_71, %c0_72, %c0_73], %85 {strides = array<i32>} : memref<1x8x64xf32, #tpu.memory_space<vmem>>, vector<1x8x64xf32>,
    return
  }
  func.func @transform_0(%arg0: i32) -> i32 {
    %c0_i32 = arith.constant 0 : i32
    %c0_i32_0 = arith.constant 0 : i32
    return %c0_i32 : i32
  }
  func.func @transform_1(%arg0: i32) -> (i32, i32, i32) {
    %c0_i32 = arith.constant 0 : i32
    %c0_i32_0 = arith.constant 0 : i32
    %c0_i32_1 = arith.constant 0 : i32
    return %arg0, %c0_i32, %c0_i32_0 : i32, i32, i32
  }
  func.func @transform_2(%arg0: i32) -> (i32, i32, i32) {
    %c0_i32 = arith.constant 0 : i32
    %c0_i32_0 = arith.constant 0 : i32
    %c0_i32_1 = arith.constant 0 : i32
    %c0_i32_2 = arith.constant 0 : i32
    return %c0_i32, %c0_i32_0, %c0_i32_1 : i32, i32, i32
  }
  func.func @transform_3(%arg0: i32) -> (i32, i32) {
    %c0_i32 = arith.constant 0 : i32
    %c0_i32_0 = arith.constant 0 : i32
    %c0_i32_1 = arith.constant 0 : i32
    return %c0_i32, %c0_i32_0 : i32, i32
  }
  func.func @transform_4(%arg0: i32) -> (i32, i32, i32) {
    %c0_i32 = arith.constant 0 : i32
    %c0_i32_0 = arith.constant 0 : i32
    %c0_i32_1 = arith.constant 0 : i32
    %c0_i32_2 = arith.constant 0 : i32
    return %c0_i32, %c0_i32_0, %c0_i32_1 : i32, i32, i32
  }
  func.func @transform_5(%arg0: i32) -> (i32, i32) {
    %c0_i32 = arith.constant 0 : i32
    %c0_i32_0 = arith.constant 0 : i32
    %c0_i32_1 = arith.constant 0 : i32
    return %c0_i32, %c0_i32_0 : i32, i32
  }
  func.func @transform_6(%arg0: i32) -> (i32, i32, i32) {
    %c0_i32 = arith.constant 0 : i32
    %c0_i32_0 = arith.constant 0 : i32
    %c0_i32_1 = arith.constant 0 : i32
    %c0_i32_2 = arith.constant 0 : i32
    return %c0_i32, %c0_i32_0, %c0_i32_1 : i32, i32, i32
  }
  func.func @transform_7(%arg0: i32) -> (i32, i32) {
    %c0_i32 = arith.constant 0 : i32
    %c0_i32_0 = arith.constant 0 : i32
    %c0_i32_1 = arith.constant 0 : i32
    return %c0_i32, %c0_i32_0 : i32, i32
  }
  func.func @transform_8(%arg0: i32) -> (i32, i32, i32) {
    %c0_i32 = arith.constant 0 : i32
    %c0_i32_0 = arith.constant 0 : i32
    %c0_i32_1 = arith.constant 0 : i32
    return %arg0, %c0_i32, %c0_i32_0 : i32, i32, i32
  }
  func.func @transform_9(%arg0: i32) -> (i32, i32, i32) {
    %c0_i32 = arith.constant 0 : i32
    %c0_i32_0 = arith.constant 0 : i32
    %c0_i32_1 = arith.constant 0 : i32
    return %arg0, %c0_i32, %c0_i32_0 : i32, i32, i32
  }
}

</mosaic_0001>

<llo_original>
// kernel: encoding_block_forward.1
$region0: #{encoding_block_forward.1}
  #allocation0 [shape = 'u32[]', space=smem, size = 0x4, offset = 0x4, fixed_abs, tag = 'smem constant byte address 0x4 - core index']
  #allocation1 [shape = 'u32[144,128]{1,0:T(1,128)}', space=vmem, size = 0x12000, scoped, tag = 'internal scratch']
  #allocation2 [shape = 'f32[18,128]{1,0:T(8,128)}', space=vmem, size = 0x3000, scoped, tag = 'scratch operand']
  #allocation3 [shape = 'f32[18,128]{1,0:T(8,128)}', space=vmem, size = 0x3000, scoped, tag = 'scratch operand']
  #allocation4 [shape = 'f32[1]{0:T(128)S(6)}', space=smem, size = 0x200, scoped, tag = 'scoped memory for encoding_block_forward.1']
  %s0 = inlined_call_operand.<no memory space> [shape: f32[1], index: 0, kind: input, shape index: {}]
  %s1 = inlined_call_operand.vmem [shape: f32[2,18,64], index: 1, kind: input, shape index: {}]
  %s2 = inlined_call_operand.vmem [shape: bf16[3,64,128], index: 2, kind: input, shape index: {}]
  %s3 = inlined_call_operand.vmem [shape: f32[1,128], index: 3, kind: input, shape index: {}]
  %s4 = inlined_call_operand.vmem [shape: bf16[3,128,128], index: 4, kind: input, shape index: {}]
  %s5 = inlined_call_operand.vmem [shape: f32[1,128], index: 5, kind: input, shape index: {}]
  %s6 = inlined_call_operand.vmem [shape: bf16[3,128,64], index: 6, kind: input, shape index: {}]
  %s7 = inlined_call_operand.vmem [shape: f32[1,64], index: 7, kind: input, shape index: {}]
  %s8 = inlined_call_operand.vmem [shape: f32[2,16,128], index: 8, kind: output, shape index: {0}]
  %s9 = inlined_call_operand.vmem [shape: f32[2,8,64], index: 9, kind: output, shape index: {1}]
  %10 = xla_tuple %s8, %s9
  %s11 = sld [smem:[#allocation0]]
  $region73: #{encoding_block_forward.1} parent=0
    _
  %s13 = ssub.s32 1, %s11
  %s14 = scalar_select 0, %s13, %s11
  %15 = sst [smem:[#allocation4]] %s0
  loop: start=0, step=1, limit=4
  $region2: #{encoding_block_forward.1} parent=0 // loop_pre_header
    _
  $region3: #{encoding_block_forward.1} parent=0 // loop_header
    %s17 = sphi 0, %s21
    %p18 = scmp.ge.s32.totalorder %s17, 4
    %s25 = sphi 0, %s25
    %s27 = sphi 0, %s25
    %s28 = sphi 0, %s27
    %s42 = sphi 0, %s28
    %s48 = sphi 0, %s50
    %s51 = sphi 0, %s48
    %s52 = sphi 0, %s51
    %s68 = sphi 0, %s52
    %s72 = sphi 0, %s72
    %s74 = sphi 0, %s72
    %s75 = sphi 0, %s74
    %s89 = sphi 0, %s75
    %s93 = sphi 0, %s93
    %s95 = sphi 0, %s93
    %s96 = sphi 0, %s95
    %s110 = sphi 0, %s96
    %s114 = sphi 0, %s114
    %s116 = sphi 0, %s114
    %s117 = sphi 0, %s116
    %s131 = sphi 0, %s117
    %s135 = sphi 0, %s135
    %s137 = sphi 0, %s135
    %s138 = sphi 0, %s137
    %s152 = sphi 0, %s138
    %s156 = sphi 0, %s156
    %s158 = sphi 0, %s156
    %s159 = sphi 0, %s158
    %s173 = sphi 0, %s159
    %s177 = sphi 0, %s177
    %s179 = sphi 0, %s177
    %s180 = sphi 0, %s179
    %s194 = sphi 0, %s180
    %s200 = sphi 0, %s202
    %s203 = sphi 0, %s200
    %s204 = sphi 0, %s203
    %s220 = sphi 0, %s204
    %s226 = sphi 0, %s228
    %s229 = sphi 0, %s226
    %s230 = sphi 0, %s229
    %s246 = sphi 0, %s230
  $region4: #{encoding_block_forward.1} parent=0 // loop_header_branch
    %20 = sbr.rel (%p18) target = $region8
  $region5: #{encoding_block_forward.1} parent=0 // loop_body
    %s22 = ssub.s32 %s17, 1
    %s23 = ssub.s32 %s17, 2
    %s24 = sadd.s32 %s17, 1
    %s26 = sadd.s32 %s25, 1
    %p29 = scmp.eq.s32.totalorder %s17, 1
    %p30 = scmp.ne.s32.totalorder %s25, %s27
    %p31 = scmp.eq.s32.totalorder %s17, 0
    %p32 = por %p30, %p31
    %p33 = scmp.ne.s32.totalorder %s25, %s27
    %p34 = scmp.eq.s32.totalorder %s22, 1
    %p35 = por %p33, %p34
    %p36 = scmp.ne.s32.totalorder %s27, %s28
    %p37 = scmp.eq.s32.totalorder %s22, 0
    %p38 = por %p36, %p37
    %p39 = scmp.ne.s32.totalorder %s27, %s28
    %p40 = scmp.eq.s32.totalorder %s23, 1
    %p41 = por %p39, %p40
    %p43 = scmp.ne.s32.totalorder %s28, %s42
    %p44 = scmp.eq.s32.totalorder %s23, 0
    %p45 = por %p43, %p44
    %s46 = ssub.s32 %s17, %s24
    %p47 = scmp.eq.s32.totalorder %s46, 0
    %s49 = sadd.s32 %s48, 1
    %s50 = scalar_select %p47, %s48, %s49
    %p53 = pneg %p47
    %p54 = scmp.eq.s32.totalorder %s17, 1
    %p55 = por %p53, %p54
    %p56 = scmp.ne.s32.totalorder %s48, %s51
    %p57 = scmp.eq.s32.totalorder %s17, 0
    %p58 = por %p56, %p57
    %p59 = scmp.ne.s32.totalorder %s48, %s51
    %p60 = scmp.eq.s32.totalorder %s22, 1
    %p61 = por %p59, %p60
    %p62 = scmp.ne.s32.totalorder %s51, %s52
    %p63 = scmp.eq.s32.totalorder %s22, 0
    %p64 = por %p62, %p63
    %p65 = scmp.ne.s32.totalorder %s51, %s52
    %p66 = scmp.eq.s32.totalorder %s23, 1
    %p67 = por %p65, %p66
    %p69 = scmp.ne.s32.totalorder %s52, %s68
    %p70 = scmp.eq.s32.totalorder %s23, 0
    %p71 = por %p69, %p70
    %s73 = sadd.s32 %s72, 1
    %p76 = scmp.eq.s32.totalorder %s17, 1
    %p77 = scmp.ne.s32.totalorder %s72, %s74
    %p78 = scmp.eq.s32.totalorder %s17, 0
    %p79 = por %p77, %p78
    %p80 = scmp.ne.s32.totalorder %s72, %s74
    %p81 = scmp.eq.s32.totalorder %s22, 1
    %p82 = por %p80, %p81
    %p83 = scmp.ne.s32.totalorder %s74, %s75
    %p84 = scmp.eq.s32.totalorder %s22, 0
    %p85 = por %p83, %p84
    %p86 = scmp.ne.s32.totalorder %s74, %s75
    %p87 = scmp.eq.s32.totalorder %s23, 1
    %p88 = por %p86, %p87
    %p90 = scmp.ne.s32.totalorder %s75, %s89
    %p91 = scmp.eq.s32.totalorder %s23, 0
    %p92 = por %p90, %p91
    %s94 = sadd.s32 %s93, 1
    %p97 = scmp.eq.s32.totalorder %s17, 1
    %p98 = scmp.ne.s32.totalorder %s93, %s95
    %p99 = scmp.eq.s32.totalorder %s17, 0
    %p100 = por %p98, %p99
    %p101 = scmp.ne.s32.totalorder %s93, %s95
    %p102 = scmp.eq.s32.totalorder %s22, 1
    %p103 = por %p101, %p102
    %p104 = scmp.ne.s32.totalorder %s95, %s96
    %p105 = scmp.eq.s32.totalorder %s22, 0
    %p106 = por %p104, %p105
    %p107 = scmp.ne.s32.totalorder %s95, %s96
    %p108 = scmp.eq.s32.totalorder %s23, 1
    %p109 = por %p107, %p108
    %p111 = scmp.ne.s32.totalorder %s96, %s110
    %p112 = scmp.eq.s32.totalorder %s23, 0
    %p113 = por %p111, %p112
    %s115 = sadd.s32 %s114, 1
    %p118 = scmp.eq.s32.totalorder %s17, 1
    %p119 = scmp.ne.s32.totalorder %s114, %s116
    %p120 = scmp.eq.s32.totalorder %s17, 0
    %p121 = por %p119, %p120
    %p122 = scmp.ne.s32.totalorder %s114, %s116
    %p123 = scmp.eq.s32.totalorder %s22, 1
    %p124 = por %p122, %p123
    %p125 = scmp.ne.s32.totalorder %s116, %s117
    %p126 = scmp.eq.s32.totalorder %s22, 0
    %p127 = por %p125, %p126
    %p128 = scmp.ne.s32.totalorder %s116, %s117
    %p129 = scmp.eq.s32.totalorder %s23, 1
    %p130 = por %p128, %p129
    %p132 = scmp.ne.s32.totalorder %s117, %s131
    %p133 = scmp.eq.s32.totalorder %s23, 0
    %p134 = por %p132, %p133
    %s136 = sadd.s32 %s135, 1
    %p139 = scmp.eq.s32.totalorder %s17, 1
    %p140 = scmp.ne.s32.totalorder %s135, %s137
    %p141 = scmp.eq.s32.totalorder %s17, 0
    %p142 = por %p140, %p141
    %p143 = scmp.ne.s32.totalorder %s135, %s137
    %p144 = scmp.eq.s32.totalorder %s22, 1
    %p145 = por %p143, %p144
    %p146 = scmp.ne.s32.totalorder %s137, %s138
    %p147 = scmp.eq.s32.totalorder %s22, 0
    %p148 = por %p146, %p147
    %p149 = scmp.ne.s32.totalorder %s137, %s138
    %p150 = scmp.eq.s32.totalorder %s23, 1
    %p151 = por %p149, %p150
    %p153 = scmp.ne.s32.totalorder %s138, %s152
    %p154 = scmp.eq.s32.totalorder %s23, 0
    %p155 = por %p153, %p154
    %s157 = sadd.s32 %s156, 1
    %p160 = scmp.eq.s32.totalorder %s17, 1
    %p161 = scmp.ne.s32.totalorder %s156, %s158
    %p162 = scmp.eq.s32.totalorder %s17, 0
    %p163 = por %p161, %p162
    %p164 = scmp.ne.s32.totalorder %s156, %s158
    %p165 = scmp.eq.s32.totalorder %s22, 1
    %p166 = por %p164, %p165
    %p167 = scmp.ne.s32.totalorder %s158, %s159
    %p168 = scmp.eq.s32.totalorder %s22, 0
    %p169 = por %p167, %p168
    %p170 = scmp.ne.s32.totalorder %s158, %s159
    %p171 = scmp.eq.s32.totalorder %s23, 1
    %p172 = por %p170, %p171
    %p174 = scmp.ne.s32.totalorder %s159, %s173
    %p175 = scmp.eq.s32.totalorder %s23, 0
    %p176 = por %p174, %p175
    %s178 = sadd.s32 %s177, 1
    %p181 = scmp.eq.s32.totalorder %s17, 1
    %p182 = scmp.ne.s32.totalorder %s177, %s179
    %p183 = scmp.eq.s32.totalorder %s17, 0
    %p184 = por %p182, %p183
    %p185 = scmp.ne.s32.totalorder %s177, %s179
    %p186 = scmp.eq.s32.totalorder %s22, 1
    %p187 = por %p185, %p186
    %p188 = scmp.ne.s32.totalorder %s179, %s180
    %p189 = scmp.eq.s32.totalorder %s22, 0
    %p190 = por %p188, %p189
    %p191 = scmp.ne.s32.totalorder %s179, %s180
    %p192 = scmp.eq.s32.totalorder %s23, 1
    %p193 = por %p191, %p192
    %p195 = scmp.ne.s32.totalorder %s180, %s194
    %p196 = scmp.eq.s32.totalorder %s23, 0
    %p197 = por %p195, %p196
    %s198 = ssub.s32 %s17, %s24
    %p199 = scmp.eq.s32.totalorder %s198, 0
    %s201 = sadd.s32 %s200, 1
    %s202 = scalar_select %p199, %s200, %s201
    %p205 = pneg %p199
    %p206 = scmp.eq.s32.totalorder %s17, 1
    %p207 = por %p205, %p206
    %p208 = scmp.ne.s32.totalorder %s200, %s203
    %p209 = scmp.eq.s32.totalorder %s17, 0
    %p210 = por %p208, %p209
    %p211 = scmp.ne.s32.totalorder %s200, %s203
    %p212 = scmp.eq.s32.totalorder %s22, 1
    %p213 = por %p211, %p212
    %p214 = scmp.ne.s32.totalorder %s203, %s204
    %p215 = scmp.eq.s32.totalorder %s22, 0
    %p216 = por %p214, %p215
    %p217 = scmp.ne.s32.totalorder %s203, %s204
    %p218 = scmp.eq.s32.totalorder %s23, 1
    %p219 = por %p217, %p218
    %p221 = scmp.ne.s32.totalorder %s204, %s220
    %p222 = scmp.eq.s32.totalorder %s23, 0
    %p223 = por %p221, %p222
    %s224 = ssub.s32 %s17, %s24
    %p225 = scmp.eq.s32.totalorder %s224, 0
    %s227 = sadd.s32 %s226, 1
    %s228 = scalar_select %p225, %s226, %s227
    %p231 = pneg %p225
    %p232 = scmp.eq.s32.totalorder %s17, 1
    %p233 = por %p231, %p232
    %p234 = scmp.ne.s32.totalorder %s226, %s229
    %p235 = scmp.eq.s32.totalorder %s17, 0
    %p236 = por %p234, %p235
    %p237 = scmp.ne.s32.totalorder %s226, %s229
    %p238 = scmp.eq.s32.totalorder %s22, 1
    %p239 = por %p237, %p238
    %p240 = scmp.ne.s32.totalorder %s229, %s230
    %p241 = scmp.eq.s32.totalorder %s22, 0
    %p242 = por %p240, %p241
    %p243 = scmp.ne.s32.totalorder %s229, %s230
    %p244 = scmp.eq.s32.totalorder %s23, 1
    %p245 = por %p243, %p244
    %p247 = scmp.ne.s32.totalorder %s230, %s246
    %p248 = scmp.eq.s32.totalorder %s23, 0
    %p249 = por %p247, %p248
    %p250 = scmp.le.s32.totalorder 1, %s17
    %p251 = scmp.lt.s32.totalorder %s17, 3
    %p252 = pnand %p250, %p251
    %p253 = pneg %p252
    // Predicated region
    $region9: #{encoding_block_forward.1} parent=5 // pred_check
      _
    $region10: #{encoding_block_forward.1} parent=5 // pred_check_branch
      %255 = sbr.rel (%p252) target = $region12
    $region11: #{encoding_block_forward.1} parent=5 // pred_region
      %s256 = ssub.s32 %s17, 1
      // Predicated region
      $region13: #{encoding_block_forward.1} parent=11 // pred_check
        %p257 = pneg %p38
      $region14: #{encoding_block_forward.1} parent=11 // pred_check_branch
        %259 = sbr.rel (%p257) target = $region16
      $region15: #{encoding_block_forward.1} parent=11 // pred_region
        _
      $region16: #{encoding_block_forward.1} parent=11 // pred_fallthru
        _
      // Predicated region
      $region17: #{encoding_block_forward.1} parent=11 // pred_check
        %p260 = pneg %p85
      $region18: #{encoding_block_forward.1} parent=11 // pred_check_branch
        %262 = sbr.rel (%p260) target = $region20
      $region19: #{encoding_block_forward.1} parent=11 // pred_region
        _
      $region20: #{encoding_block_forward.1} parent=11 // pred_fallthru
        _
      // Predicated region
      $region21: #{encoding_block_forward.1} parent=11 // pred_check
        %p263 = pneg %p106
      $region22: #{encoding_block_forward.1} parent=11 // pred_check_branch
        %265 = sbr.rel (%p263) target = $region24
      $region23: #{encoding_block_forward.1} parent=11 // pred_region
        _
      $region24: #{encoding_block_forward.1} parent=11 // pred_fallthru
        _
      // Predicated region
      $region25: #{encoding_block_forward.1} parent=11 // pred_check
        %p266 = pneg %p127
      $region26: #{encoding_block_forward.1} parent=11 // pred_check_branch
        %268 = sbr.rel (%p266) target = $region28
      $region27: #{encoding_block_forward.1} parent=11 // pred_region
        _
      $region28: #{encoding_block_forward.1} parent=11 // pred_fallthru
        _
      // Predicated region
      $region29: #{encoding_block_forward.1} parent=11 // pred_check
        %p269 = pneg %p148
      $region30: #{encoding_block_forward.1} parent=11 // pred_check_branch
        %271 = sbr.rel (%p269) target = $region32
      $region31: #{encoding_block_forward.1} parent=11 // pred_region
        _
      $region32: #{encoding_block_forward.1} parent=11 // pred_fallthru
        _
      // Predicated region
      $region33: #{encoding_block_forward.1} parent=11 // pred_check
        %p272 = pneg %p169
      $region34: #{encoding_block_forward.1} parent=11 // pred_check_branch
        %274 = sbr.rel (%p272) target = $region36
      $region35: #{encoding_block_forward.1} parent=11 // pred_region
        _
      $region36: #{encoding_block_forward.1} parent=11 // pred_fallthru
        _
      // Predicated region
      $region37: #{encoding_block_forward.1} parent=11 // pred_check
        %p275 = pneg %p190
      $region38: #{encoding_block_forward.1} parent=11 // pred_check_branch
        %277 = sbr.rel (%p275) target = $region40
      $region39: #{encoding_block_forward.1} parent=11 // pred_region
        _
      $region40: #{encoding_block_forward.1} parent=11 // pred_fallthru
        _
    $region12: #{encoding_block_forward.1} parent=5 // pred_fallthru
      _
    %p278 = scmp.lt.s32.totalorder %s17, 2
    // Predicated region
    $region41: #{encoding_block_forward.1} parent=5 // pred_check
      %p279 = pneg %p278
    $region42: #{encoding_block_forward.1} parent=5 // pred_check_branch
      %281 = sbr.rel (%p279) target = $region44
    $region43: #{encoding_block_forward.1} parent=5 // pred_region
      // Predicated region
      $region45: #{encoding_block_forward.1} parent=43 // pred_check
        %p282 = pneg %p58
      $region46: #{encoding_block_forward.1} parent=43 // pred_check_branch
        %284 = sbr.rel (%p282) target = $region48
      $region47: #{encoding_block_forward.1} parent=43 // pred_region
        %p285 = scmp.lt.s32.totalorder %s17, 1
        %s286 = scalar_select %p285, %s17, 1
        %s287 = smul.addr %s286, 3
        %s288 = smul.addr %s287, 8
        %s289 = scalar_lea.vmem %s1, %s288
      $region48: #{encoding_block_forward.1} parent=43 // pred_fallthru
        _
    $region44: #{encoding_block_forward.1} parent=5 // pred_fallthru
      _
    %p290 = scmp.le.s32.totalorder 1, %s17
    %p291 = scmp.lt.s32.totalorder %s17, 3
    %p292 = pnand %p290, %p291
    %p293 = pneg %p292
    // Predicated region
    $region49: #{encoding_block_forward.1} parent=5 // pred_check
      _
    $region50: #{encoding_block_forward.1} parent=5 // pred_check_branch
      %295 = sbr.rel (%p292) target = $region52
    $region51: #{encoding_block_forward.1} parent=5 // pred_region
      %s296 = ssub.s32 %s17, 1
      %p297 = pneg %p38
      %p298 = pneg %p35
      %p299 = scmp.lt.s32.totalorder %s22, 1
      %s300 = scalar_select %p299, %s22, 1
      %s301 = smul.addr %s300, 3
      %s302 = smul.addr %s301, 8
      %s303 = scalar_lea.vmem %s1, %s302
      %p304 = pneg %p64
      %p305 = pneg %p61
      %p306 = pneg %p85
      %p307 = pneg %p82
      %p308 = pneg %p106
      %p309 = pneg %p103
      %p310 = pneg %p127
      %p311 = pneg %p124
      %p312 = pneg %p148
      %p313 = pneg %p145
      %p314 = pneg %p169
      %p315 = pneg %p166
      %p316 = pneg %p190
      %p317 = pneg %p187
      %p318 = pneg %p216
      %p319 = pneg %p213
      %p320 = scmp.lt.s32.totalorder %s22, 1
      %s321 = scalar_select %p320, %s22, 1
      %s322 = smul.addr %s321, 2
      %s323 = smul.addr %s322, 8
      %s324 = scalar_lea.vmem %s8, %s323
      %p325 = pneg %p242
      %p326 = pneg %p239
      %p327 = scmp.lt.s32.totalorder %s22, 1
      %s328 = scalar_select %p327, %s22, 1
      %s329 = smul.addr %s328, 8
      %s330 = scalar_lea.vmem %s9, %s329
      %p331 = scmp.lt.s32.totalorder %s22, 1
      %s332 = scalar_select %p331, %s22, 1
      %s333 = smul.addr %s332, 3
      %s334 = smul.addr %s333, 8
      %s335 = scalar_lea.vmem %s1, %s334
      %p336 = scmp.lt.s32.totalorder %s22, 1
      %s337 = scalar_select %p336, %s22, 1
      %s338 = smul.addr %s337, 2
      %s339 = smul.addr %s338, 8
      %s340 = scalar_lea.vmem %s8, %s339
      %p341 = scmp.lt.s32.totalorder %s22, 1
      %s342 = scalar_select %p341, %s22, 1
      %s343 = smul.addr %s342, 8
      %s344 = scalar_lea.vmem %s9, %s343
      %s346 = sld [smem:[#allocation4]]
      %347 = vst [vmem:[#allocation2] sm:$0x1] 0.0
      %348 = vst [vmem:[#allocation2 + $0x11] sm:$0x1] 0.0
      %349 = vst [vmem:[#allocation3] sm:$0x1] 0.0
      %350 = vst [vmem:[#allocation3 + $0x11] sm:$0x1] 0.0
      %v351 = vld [vmem:[%s335] sm:$0xff]
      %v352 = vld [vmem:[%s335 + $0x8] sm:$0xff]
      %v353 = vld [vmem:[%s335 + $0x10] sm:$0x3]
      %v354 = vpack.c.bf16 %v352, %v351
      %v355 = vld [vmem:[%s2] sm:$0xf]
      %v356 = vld [vmem:[%s2 + $0x4] sm:$0xf]
      %v357 = vld [vmem:[%s2 + $0x8] sm:$0xf]
      %v358 = vld [vmem:[%s2 + $0xc] sm:$0xf]
      %v359 = vld [vmem:[%s2 + $0x10] sm:$0xf]
      %v360 = vld [vmem:[%s2 + $0x14] sm:$0xf]
      %v361 = vld [vmem:[%s2 + $0x18] sm:$0xf]
      %v362 = vld [vmem:[%s2 + $0x1c] sm:$0xf]
      %v363 = vpack.c.bf16 %v353, %v353
      %s364 = scalar_lea.vmem %s2, 32
      %v365 = vld [vmem:[%s364] sm:$0xf]
      %v366 = vld [vmem:[%s364 + $0x4] sm:$0xf]
      %v367 = vld [vmem:[%s364 + $0x8] sm:$0xf]
      %v368 = vld [vmem:[%s364 + $0xc] sm:$0xf]
      %v369 = vld [vmem:[%s364 + $0x10] sm:$0xf]
      %v370 = vld [vmem:[%s364 + $0x14] sm:$0xf]
      %v371 = vld [vmem:[%s364 + $0x18] sm:$0xf]
      %v372 = vld [vmem:[%s364 + $0x1c] sm:$0xf]
      %vm373 = vsmask.f32 7424
      %v375 = vshrl.u32 %v354, 16
      %v377 = vshll.u32 %v354, 16
      %v379 = vrot.slane %v377, 1
      %v380 = vor.u32 %v375, %v379
      %v382 = vshll.u32 %v363, 16
      %v384 = vrot.slane %v382, 1
      %v385 = vsel %vm373, %v380, %v384
      %v394 = vunpack.c.l.b16 %v365
      %v395 = vunpack.c.l.b16 %v366
      %v396 = vunpack.c.l.b16 %v367
      %v397 = vunpack.c.l.b16 %v368
      %v398 = vunpack.c.l.b16 %v369
      %v399 = vunpack.c.l.b16 %v370
      %v400 = vunpack.c.l.b16 %v371
      %v401 = vunpack.c.l.b16 %v372
      %v402 = vpack.c.b16 %v395, %v394
      %v403 = vpack.c.b16 %v397, %v396
      %v404 = vpack.c.b16 %v399, %v398
      %v405 = vpack.c.b16 %v401, %v400
      %vm410 = vcmask 523264
      %v412 = vsel %vm410, %v385, 0
      %414 = vmatprep.subr.bf16.mxu0 0
      %415 = vmatpush1.bf16.msra.mxu0 %v402
      %416 = vmatprep.subr.bf16.mxu0 0
      %417 = vmatpush1.bf16.msra.mxu0 %v403
      %418 = vmatprep.subr.bf16.mxu0 0
      %419 = vmatpush1.bf16.msra.mxu0 %v404
      %420 = vmatprep.subr.bf16.mxu0 0
      %421 = vmatpush1.bf16.msra.mxu0 %v405
      %422 = vmatprep.subr.bf16.mxu0 0
      %423 = vmatpush1.bf16.msra.mxu0 0
      %424 = vmatprep.subr.bf16.mxu0 0
      %425 = vmatpush1.bf16.msra.mxu0 0
      %426 = vmatprep.subr.bf16.mxu0 0
      %427 = vmatpush1.bf16.msra.mxu0 0
      %428 = vmatprep.subr.bf16.mxu0 0
      %429 = vmatpush1.bf16.msra.mxu0 0
      %430 = vmatprep.subr.bf16.mxu0 0
      %431 = vmatpush1.bf16.msra.mxu0 0
      %432 = vmatprep.subr.bf16.mxu0 0
      %433 = vmatpush1.bf16.msra.mxu0 0
      %434 = vmatprep.subr.bf16.mxu0 0
      %435 = vmatpush1.bf16.msra.mxu0 0
      %436 = vmatprep.subr.bf16.mxu0 0
      %437 = vmatpush1.bf16.msra.mxu0 0
      %438 = vmatprep.subr.bf16.mxu0 0
      %439 = vmatpush1.bf16.msra.mxu0 0
      %440 = vmatprep.subr.bf16.mxu0 0
      %441 = vmatpush1.bf16.msra.mxu0 0
      %442 = vmatprep.subr.bf16.mxu0 0
      %443 = vmatpush1.bf16.msra.mxu0 0
      %444 = vmatprep.subr.bf16.mxu0 0
      %445 = vmatpush1.bf16.msra.mxu0 0
      %446 = vmatprep.mubr.bf16.mxu0 0
      %447 = vmatmul.mubr.bf16.gmra.mrb[0].mxu0 %v412
      %v448 = vpop.f32.mrb[0].mxu0
      %v449 = vadd.f32 0.0, %v448
      %v450 = vpop.f32.mrb[0].mxu0
      %v451 = vpop.f32.mrb[0].mxu0
      %v452 = vadd.f32 0.0, %v451
      %v453 = vpop.f32.mrb[0].mxu0
      %454 = vdwg.mxu0
      %v463 = vunpack.c.l.b16 %v355
      %v464 = vunpack.c.l.b16 %v356
      %v465 = vunpack.c.l.b16 %v357
      %v466 = vunpack.c.l.b16 %v358
      %v467 = vunpack.c.l.b16 %v359
      %v468 = vunpack.c.l.b16 %v360
      %v469 = vunpack.c.l.b16 %v361
      %v470 = vunpack.c.l.b16 %v362
      %v471 = vpack.c.b16 %v464, %v463
      %v472 = vpack.c.b16 %v466, %v465
      %v473 = vpack.c.b16 %v468, %v467
      %v474 = vpack.c.b16 %v470, %v469
      %v479 = vsel %vm410, %v354, 0
      %481 = vmatprep.subr.bf16.mxu0 0
      %482 = vmatpush1.bf16.msra.mxu0 %v471
      %483 = vmatprep.subr.bf16.mxu0 0
      %484 = vmatpush1.bf16.msra.mxu0 %v472
      %485 = vmatprep.subr.bf16.mxu0 0
      %486 = vmatpush1.bf16.msra.mxu0 %v473
      %487 = vmatprep.subr.bf16.mxu0 0
      %488 = vmatpush1.bf16.msra.mxu0 %v474
      %489 = vmatprep.subr.bf16.mxu0 0
      %490 = vmatpush1.bf16.msra.mxu0 0
      %491 = vmatprep.subr.bf16.mxu0 0
      %492 = vmatpush1.bf16.msra.mxu0 0
      %493 = vmatprep.subr.bf16.mxu0 0
      %494 = vmatpush1.bf16.msra.mxu0 0
      %495 = vmatprep.subr.bf16.mxu0 0
      %496 = vmatpush1.bf16.msra.mxu0 0
      %497 = vmatprep.subr.bf16.mxu0 0
      %498 = vmatpush1.bf16.msra.mxu0 0
      %499 = vmatprep.subr.bf16.mxu0 0
      %500 = vmatpush1.bf16.msra.mxu0 0
      %501 = vmatprep.subr.bf16.mxu0 0
      %502 = vmatpush1.bf16.msra.mxu0 0
      %503 = vmatprep.subr.bf16.mxu0 0
      %504 = vmatpush1.bf16.msra.mxu0 0
      %505 = vmatprep.subr.bf16.mxu0 0
      %506 = vmatpush1.bf16.msra.mxu0 0
      %507 = vmatprep.subr.bf16.mxu0 0
      %508 = vmatpush1.bf16.msra.mxu0 0
      %509 = vmatprep.subr.bf16.mxu0 0
      %510 = vmatpush1.bf16.msra.mxu0 0
      %511 = vmatprep.subr.bf16.mxu0 0
      %512 = vmatpush1.bf16.msra.mxu0 0
      %513 = vmatprep.mubr.bf16.mxu0 0
      %514 = vmatmul.mubr.bf16.gmra.mrb[0].mxu0 %v479
      %v515 = vpop.f32.mrb[0].mxu0
      %v516 = vadd.f32 %v449, %v515
      %v517 = vpop.f32.mrb[0].mxu0
      %v518 = vpop.f32.mrb[0].mxu0
      %v519 = vadd.f32 %v452, %v518
      %v520 = vpop.f32.mrb[0].mxu0
      %521 = vdwg.mxu0
      %s522 = scalar_lea.vmem %s2, 64
      %v523 = vld [vmem:[%s522] sm:$0xf]
      %v524 = vld [vmem:[%s522 + $0x4] sm:$0xf]
      %v525 = vld [vmem:[%s522 + $0x8] sm:$0xf]
      %v526 = vld [vmem:[%s522 + $0xc] sm:$0xf]
      %v527 = vld [vmem:[%s522 + $0x10] sm:$0xf]
      %v528 = vld [vmem:[%s522 + $0x14] sm:$0xf]
      %v529 = vld [vmem:[%s522 + $0x18] sm:$0xf]
      %v530 = vld [vmem:[%s522 + $0x1c] sm:$0xf]
      %vm533 = vcmask 1046528
      %v534 = vrot.slane %v354, 1
      %v535 = vrot.slane %v363, 1
      %v536 = vsel %vm533, %v534, %v535
      %v545 = vunpack.c.l.b16 %v523
      %v546 = vunpack.c.l.b16 %v524
      %v547 = vunpack.c.l.b16 %v525
      %v548 = vunpack.c.l.b16 %v526
      %v549 = vunpack.c.l.b16 %v527
      %v550 = vunpack.c.l.b16 %v528
      %v551 = vunpack.c.l.b16 %v529
      %v552 = vunpack.c.l.b16 %v530
      %v553 = vpack.c.b16 %v546, %v545
      %v554 = vpack.c.b16 %v548, %v547
      %v555 = vpack.c.b16 %v550, %v549
      %v556 = vpack.c.b16 %v552, %v551
      %v562 = vsel %vm410, %v536, 0
      %564 = vmatprep.subr.bf16.mxu0 0
      %565 = vmatpush1.bf16.msra.mxu0 %v553
      %566 = vmatprep.subr.bf16.mxu0 0
      %567 = vmatpush1.bf16.msra.mxu0 %v554
      %568 = vmatprep.subr.bf16.mxu0 0
      %569 = vmatpush1.bf16.msra.mxu0 %v555
      %570 = vmatprep.subr.bf16.mxu0 0
      %571 = vmatpush1.bf16.msra.mxu0 %v556
      %572 = vmatprep.subr.bf16.mxu0 0
      %573 = vmatpush1.bf16.msra.mxu0 0
      %574 = vmatprep.subr.bf16.mxu0 0
      %575 = vmatpush1.bf16.msra.mxu0 0
      %576 = vmatprep.subr.bf16.mxu0 0
      %577 = vmatpush1.bf16.msra.mxu0 0
      %578 = vmatprep.subr.bf16.mxu0 0
      %579 = vmatpush1.bf16.msra.mxu0 0
      %580 = vmatprep.subr.bf16.mxu0 0
      %581 = vmatpush1.bf16.msra.mxu0 0
      %582 = vmatprep.subr.bf16.mxu0 0
      %583 = vmatpush1.bf16.msra.mxu0 0
      %584 = vmatprep.subr.bf16.mxu0 0
      %585 = vmatpush1.bf16.msra.mxu0 0
      %586 = vmatprep.subr.bf16.mxu0 0
      %587 = vmatpush1.bf16.msra.mxu0 0
      %588 = vmatprep.subr.bf16.mxu0 0
      %589 = vmatpush1.bf16.msra.mxu0 0
      %590 = vmatprep.subr.bf16.mxu0 0
      %591 = vmatpush1.bf16.msra.mxu0 0
      %592 = vmatprep.subr.bf16.mxu0 0
      %593 = vmatpush1.bf16.msra.mxu0 0
      %594 = vmatprep.subr.bf16.mxu0 0
      %595 = vmatpush1.bf16.msra.mxu0 0
      %596 = vmatprep.mubr.bf16.mxu0 0
      %597 = vmatmul.mubr.bf16.gmra.mrb[0].mxu0 %v562
      %v598 = vpop.f32.mrb[0].mxu0
      %v599 = vadd.f32 0.0, %v598
      %v600 = vpop.f32.mrb[0].mxu0
      %v601 = vpop.f32.mrb[0].mxu0
      %v602 = vadd.f32 0.0, %v601
      %v603 = vpop.f32.mrb[0].mxu0
      %604 = vdwg.mxu0
      %v605 = vadd.f32 %v516, %v599
      %v606 = vadd.f32 %v519, %v602
      %v607 = vld [vmem:[%s3] sm:$0x1]
      %v609 = vlaneseq
      %v610 = vshrl.u32 %v609, 7
      %v611 = vsub.s32 0, %v610
      %v612 = vrot.slane %v607, %v611
      %v614 = vadd.f32 %v605, %v612
      %v615 = vadd.f32 %v606, %v612
      %vm616 = vcmp.ge.f32.partialorder %v614, 0.0
      %vm617 = vcmp.ge.f32.partialorder %v615, 0.0
      %v618 = vstv %s346
      %v619 = vmul.f32 %v618, %v614
      %v620 = vmul.f32 %v618, %v615
      %v621 = vsel %vm616, %v614, %v619
      %v622 = vsel %vm617, %v615, %v620
      %623 = vst [vmem:[#allocation2 + $0x1] sm:$0xff] %v621
      %624 = vst [vmem:[#allocation2 + $0x9] sm:$0xff] %v622
      %v625 = vld [vmem:[#allocation2] sm:$0xff]
      %v626 = vld [vmem:[#allocation2 + $0x8] sm:$0xff]
      %v627 = vpack.c.bf16 %v626, %v625
      %v628 = vld [vmem:[%s4] sm:$0xf]
      %v629 = vld [vmem:[%s4 + $0x4] sm:$0xf]
      %v630 = vld [vmem:[%s4 + $0x8] sm:$0xf]
      %v631 = vld [vmem:[%s4 + $0xc] sm:$0xf]
      %v632 = vld [vmem:[%s4 + $0x10] sm:$0xf]
      %v633 = vld [vmem:[%s4 + $0x14] sm:$0xf]
      %v634 = vld [vmem:[%s4 + $0x18] sm:$0xf]
      %v635 = vld [vmem:[%s4 + $0x1c] sm:$0xf]
      %v636 = vld [vmem:[%s4 + $0x20] sm:$0xf]
      %v637 = vld [vmem:[%s4 + $0x24] sm:$0xf]
      %v638 = vld [vmem:[%s4 + $0x28] sm:$0xf]
      %v639 = vld [vmem:[%s4 + $0x2c] sm:$0xf]
      %v640 = vld [vmem:[%s4 + $0x30] sm:$0xf]
      %v641 = vld [vmem:[%s4 + $0x34] sm:$0xf]
      %v642 = vld [vmem:[%s4 + $0x38] sm:$0xf]
      %v643 = vld [vmem:[%s4 + $0x3c] sm:$0xf]
      %v644 = vld [vmem:[#allocation2 + $0x1] sm:$0xff]
      %v645 = vld [vmem:[#allocation2 + $0x9] sm:$0xff]
      %v646 = vpack.c.bf16 %v645, %v644
      %s647 = scalar_lea.vmem %s4, 64
      %v648 = vld [vmem:[%s647] sm:$0xf]
      %v649 = vld [vmem:[%s647 + $0x4] sm:$0xf]
      %v650 = vld [vmem:[%s647 + $0x8] sm:$0xf]
      %v651 = vld [vmem:[%s647 + $0xc] sm:$0xf]
      %v652 = vld [vmem:[%s647 + $0x10] sm:$0xf]
      %v653 = vld [vmem:[%s647 + $0x14] sm:$0xf]
      %v654 = vld [vmem:[%s647 + $0x18] sm:$0xf]
      %v655 = vld [vmem:[%s647 + $0x1c] sm:$0xf]
      %v656 = vld [vmem:[%s647 + $0x20] sm:$0xf]
      %v657 = vld [vmem:[%s647 + $0x24] sm:$0xf]
      %v658 = vld [vmem:[%s647 + $0x28] sm:$0xf]
      %v659 = vld [vmem:[%s647 + $0x2c] sm:$0xf]
      %v660 = vld [vmem:[%s647 + $0x30] sm:$0xf]
      %v661 = vld [vmem:[%s647 + $0x34] sm:$0xf]
      %v662 = vld [vmem:[%s647 + $0x38] sm:$0xf]
      %v663 = vld [vmem:[%s647 + $0x3c] sm:$0xf]
      %v680 = vunpack.c.l.b16 %v648
      %v681 = vunpack.c.l.b16 %v649
      %v682 = vunpack.c.l.b16 %v650
      %v683 = vunpack.c.l.b16 %v651
      %v684 = vunpack.c.l.b16 %v652
      %v685 = vunpack.c.l.b16 %v653
      %v686 = vunpack.c.l.b16 %v654
      %v687 = vunpack.c.l.b16 %v655
      %v688 = vunpack.c.l.b16 %v656
      %v689 = vunpack.c.l.b16 %v657
      %v690 = vunpack.c.l.b16 %v658
      %v691 = vunpack.c.l.b16 %v659
      %v692 = vunpack.c.l.b16 %v660
      %v693 = vunpack.c.l.b16 %v661
      %v694 = vunpack.c.l.b16 %v662
      %v695 = vunpack.c.l.b16 %v663
      %v696 = vpack.c.b16 %v681, %v680
      %v697 = vpack.c.b16 %v683, %v682
      %v698 = vpack.c.b16 %v685, %v684
      %v699 = vpack.c.b16 %v687, %v686
      %v700 = vpack.c.b16 %v689, %v688
      %v701 = vpack.c.b16 %v691, %v690
      %v702 = vpack.c.b16 %v693, %v692
      %v703 = vpack.c.b16 %v695, %v694
      %712 = vmatprep.subr.bf16.mxu0 0
      %713 = vmatpush1.bf16.msra.mxu0 %v696
      %714 = vmatprep.subr.bf16.mxu0 0
      %715 = vmatpush1.bf16.msra.mxu0 %v697
      %716 = vmatprep.subr.bf16.mxu0 0
      %717 = vmatpush1.bf16.msra.mxu0 %v698
      %718 = vmatprep.subr.bf16.mxu0 0
      %719 = vmatpush1.bf16.msra.mxu0 %v699
      %720 = vmatprep.subr.bf16.mxu0 0
      %721 = vmatpush1.bf16.msra.mxu0 %v700
      %722 = vmatprep.subr.bf16.mxu0 0
      %723 = vmatpush1.bf16.msra.mxu0 %v701
      %724 = vmatprep.subr.bf16.mxu0 0
      %725 = vmatpush1.bf16.msra.mxu0 %v702
      %726 = vmatprep.subr.bf16.mxu0 0
      %727 = vmatpush1.bf16.msra.mxu0 %v703
      %728 = vmatprep.subr.bf16.mxu0 0
      %729 = vmatpush1.bf16.msra.mxu0 0
      %730 = vmatprep.subr.bf16.mxu0 0
      %731 = vmatpush1.bf16.msra.mxu0 0
      %732 = vmatprep.subr.bf16.mxu0 0
      %733 = vmatpush1.bf16.msra.mxu0 0
      %734 = vmatprep.subr.bf16.mxu0 0
      %735 = vmatpush1.bf16.msra.mxu0 0
      %736 = vmatprep.subr.bf16.mxu0 0
      %737 = vmatpush1.bf16.msra.mxu0 0
      %738 = vmatprep.subr.bf16.mxu0 0
      %739 = vmatpush1.bf16.msra.mxu0 0
      %740 = vmatprep.subr.bf16.mxu0 0
      %741 = vmatpush1.bf16.msra.mxu0 0
      %742 = vmatprep.subr.bf16.mxu0 0
      %743 = vmatpush1.bf16.msra.mxu0 0
      %744 = vmatprep.mubr.bf16.mxu0 0
      %745 = vmatmul.mubr.bf16.gmra.mrb[0].mxu0 %v646
      %v746 = vpop.f32.mrb[0].mxu0
      %v747 = vadd.f32 0.0, %v746
      %v748 = vpop.f32.mrb[0].mxu0
      %v749 = vpop.f32.mrb[0].mxu0
      %v750 = vadd.f32 0.0, %v749
      %v751 = vpop.f32.mrb[0].mxu0
      %752 = vdwg.mxu0
      %v769 = vunpack.c.l.b16 %v628
      %v770 = vunpack.c.l.b16 %v629
      %v771 = vunpack.c.l.b16 %v630
      %v772 = vunpack.c.l.b16 %v631
      %v773 = vunpack.c.l.b16 %v632
      %v774 = vunpack.c.l.b16 %v633
      %v775 = vunpack.c.l.b16 %v634
      %v776 = vunpack.c.l.b16 %v635
      %v777 = vunpack.c.l.b16 %v636
      %v778 = vunpack.c.l.b16 %v637
      %v779 = vunpack.c.l.b16 %v638
      %v780 = vunpack.c.l.b16 %v639
      %v781 = vunpack.c.l.b16 %v640
      %v782 = vunpack.c.l.b16 %v641
      %v783 = vunpack.c.l.b16 %v642
      %v784 = vunpack.c.l.b16 %v643
      %v785 = vpack.c.b16 %v770, %v769
      %v786 = vpack.c.b16 %v772, %v771
      %v787 = vpack.c.b16 %v774, %v773
      %v788 = vpack.c.b16 %v776, %v775
      %v789 = vpack.c.b16 %v778, %v777
      %v790 = vpack.c.b16 %v780, %v779
      %v791 = vpack.c.b16 %v782, %v781
      %v792 = vpack.c.b16 %v784, %v783
      %801 = vmatprep.subr.bf16.mxu0 0
      %802 = vmatpush1.bf16.msra.mxu0 %v785
      %803 = vmatprep.subr.bf16.mxu0 0
      %804 = vmatpush1.bf16.msra.mxu0 %v786
      %805 = vmatprep.subr.bf16.mxu0 0
      %806 = vmatpush1.bf16.msra.mxu0 %v787
      %807 = vmatprep.subr.bf16.mxu0 0
      %808 = vmatpush1.bf16.msra.mxu0 %v788
      %809 = vmatprep.subr.bf16.mxu0 0
      %810 = vmatpush1.bf16.msra.mxu0 %v789
      %811 = vmatprep.subr.bf16.mxu0 0
      %812 = vmatpush1.bf16.msra.mxu0 %v790
      %813 = vmatprep.subr.bf16.mxu0 0
      %814 = vmatpush1.bf16.msra.mxu0 %v791
      %815 = vmatprep.subr.bf16.mxu0 0
      %816 = vmatpush1.bf16.msra.mxu0 %v792
      %817 = vmatprep.subr.bf16.mxu0 0
      %818 = vmatpush1.bf16.msra.mxu0 0
      %819 = vmatprep.subr.bf16.mxu0 0
      %820 = vmatpush1.bf16.msra.mxu0 0
      %821 = vmatprep.subr.bf16.mxu0 0
      %822 = vmatpush1.bf16.msra.mxu0 0
      %823 = vmatprep.subr.bf16.mxu0 0
      %824 = vmatpush1.bf16.msra.mxu0 0
      %825 = vmatprep.subr.bf16.mxu0 0
      %826 = vmatpush1.bf16.msra.mxu0 0
      %827 = vmatprep.subr.bf16.mxu0 0
      %828 = vmatpush1.bf16.msra.mxu0 0
      %829 = vmatprep.subr.bf16.mxu0 0
      %830 = vmatpush1.bf16.msra.mxu0 0
      %831 = vmatprep.subr.bf16.mxu0 0
      %832 = vmatpush1.bf16.msra.mxu0 0
      %833 = vmatprep.mubr.bf16.mxu0 0
      %834 = vmatmul.mubr.bf16.gmra.mrb[0].mxu0 %v627
      %v835 = vpop.f32.mrb[0].mxu0
      %v836 = vadd.f32 %v747, %v835
      %v837 = vpop.f32.mrb[0].mxu0
      %v838 = vpop.f32.mrb[0].mxu0
      %v839 = vadd.f32 %v750, %v838
      %v840 = vpop.f32.mrb[0].mxu0
      %841 = vdwg.mxu0
      %v842 = vld [vmem:[#allocation2 + $0x2] sm:$0xff]
      %v843 = vld [vmem:[#allocation2 + $0xa] sm:$0xff]
      %v844 = vpack.c.bf16 %v843, %v842
      %s845 = scalar_lea.vmem %s4, 128
      %v846 = vld [vmem:[%s845] sm:$0xf]
      %v847 = vld [vmem:[%s845 + $0x4] sm:$0xf]
      %v848 = vld [vmem:[%s845 + $0x8] sm:$0xf]
      %v849 = vld [vmem:[%s845 + $0xc] sm:$0xf]
      %v850 = vld [vmem:[%s845 + $0x10] sm:$0xf]
      %v851 = vld [vmem:[%s845 + $0x14] sm:$0xf]
      %v852 = vld [vmem:[%s845 + $0x18] sm:$0xf]
      %v853 = vld [vmem:[%s845 + $0x1c] sm:$0xf]
      %v854 = vld [vmem:[%s845 + $0x20] sm:$0xf]
      %v855 = vld [vmem:[%s845 + $0x24] sm:$0xf]
      %v856 = vld [vmem:[%s845 + $0x28] sm:$0xf]
      %v857 = vld [vmem:[%s845 + $0x2c] sm:$0xf]
      %v858 = vld [vmem:[%s845 + $0x30] sm:$0xf]
      %v859 = vld [vmem:[%s845 + $0x34] sm:$0xf]
      %v860 = vld [vmem:[%s845 + $0x38] sm:$0xf]
      %v861 = vld [vmem:[%s845 + $0x3c] sm:$0xf]
      %v878 = vunpack.c.l.b16 %v846
      %v879 = vunpack.c.l.b16 %v847
      %v880 = vunpack.c.l.b16 %v848
      %v881 = vunpack.c.l.b16 %v849
      %v882 = vunpack.c.l.b16 %v850
      %v883 = vunpack.c.l.b16 %v851
      %v884 = vunpack.c.l.b16 %v852
      %v885 = vunpack.c.l.b16 %v853
      %v886 = vunpack.c.l.b16 %v854
      %v887 = vunpack.c.l.b16 %v855
      %v888 = vunpack.c.l.b16 %v856
      %v889 = vunpack.c.l.b16 %v857
      %v890 = vunpack.c.l.b16 %v858
      %v891 = vunpack.c.l.b16 %v859
      %v892 = vunpack.c.l.b16 %v860
      %v893 = vunpack.c.l.b16 %v861
      %v894 = vpack.c.b16 %v879, %v878
      %v895 = vpack.c.b16 %v881, %v880
      %v896 = vpack.c.b16 %v883, %v882
      %v897 = vpack.c.b16 %v885, %v884
      %v898 = vpack.c.b16 %v887, %v886
      %v899 = vpack.c.b16 %v889, %v888
      %v900 = vpack.c.b16 %v891, %v890
      %v901 = vpack.c.b16 %v893, %v892
      %910 = vmatprep.subr.bf16.mxu0 0
      %911 = vmatpush1.bf16.msra.mxu0 %v894
      %912 = vmatprep.subr.bf16.mxu0 0
      %913 = vmatpush1.bf16.msra.mxu0 %v895
      %914 = vmatprep.subr.bf16.mxu0 0
      %915 = vmatpush1.bf16.msra.mxu0 %v896
      %916 = vmatprep.subr.bf16.mxu0 0
      %917 = vmatpush1.bf16.msra.mxu0 %v897
      %918 = vmatprep.subr.bf16.mxu0 0
      %919 = vmatpush1.bf16.msra.mxu0 %v898
      %920 = vmatprep.subr.bf16.mxu0 0
      %921 = vmatpush1.bf16.msra.mxu0 %v899
      %922 = vmatprep.subr.bf16.mxu0 0
      %923 = vmatpush1.bf16.msra.mxu0 %v900
      %924 = vmatprep.subr.bf16.mxu0 0
      %925 = vmatpush1.bf16.msra.mxu0 %v901
      %926 = vmatprep.subr.bf16.mxu0 0
      %927 = vmatpush1.bf16.msra.mxu0 0
      %928 = vmatprep.subr.bf16.mxu0 0
      %929 = vmatpush1.bf16.msra.mxu0 0
      %930 = vmatprep.subr.bf16.mxu0 0
      %931 = vmatpush1.bf16.msra.mxu0 0
      %932 = vmatprep.subr.bf16.mxu0 0
      %933 = vmatpush1.bf16.msra.mxu0 0
      %934 = vmatprep.subr.bf16.mxu0 0
      %935 = vmatpush1.bf16.msra.mxu0 0
      %936 = vmatprep.subr.bf16.mxu0 0
      %937 = vmatpush1.bf16.msra.mxu0 0
      %938 = vmatprep.subr.bf16.mxu0 0
      %939 = vmatpush1.bf16.msra.mxu0 0
      %940 = vmatprep.subr.bf16.mxu0 0
      %941 = vmatpush1.bf16.msra.mxu0 0
      %942 = vmatprep.mubr.bf16.mxu0 0
      %943 = vmatmul.mubr.bf16.gmra.mrb[0].mxu0 %v844
      %v944 = vpop.f32.mrb[0].mxu0
      %v945 = vadd.f32 0.0, %v944
      %v946 = vpop.f32.mrb[0].mxu0
      %v947 = vpop.f32.mrb[0].mxu0
      %v948 = vadd.f32 0.0, %v947
      %v949 = vpop.f32.mrb[0].mxu0
      %950 = vdwg.mxu0
      %v951 = vadd.f32 %v836, %v945
      %v952 = vadd.f32 %v839, %v948
      %v953 = vld [vmem:[%s5] sm:$0x1]
      %v955 = vlaneseq
      %v956 = vshrl.u32 %v955, 7
      %v957 = vsub.s32 0, %v956
      %v958 = vrot.slane %v953, %v957
      %v960 = vadd.f32 %v951, %v958
      %v961 = vadd.f32 %v952, %v958
      %962 = vst [vmem:[%s340] sm:$0xff] %v960
      %963 = vst [vmem:[%s340 + $0x8] sm:$0xff] %v961
      %964 = vst [vmem:[#allocation3 + $0x1] sm:$0xff] %v960
      %965 = vst [vmem:[#allocation3 + $0x9] sm:$0xff] %v961
      %v966 = vld [vmem:[#allocation3] ss:$2 sm:$0xff]
      %v967 = vpack.c.bf16 %v966, %v966
      %v968 = vld [vmem:[%s6] sm:$0xf]
      %v969 = vld [vmem:[%s6 + $0x4] sm:$0xf]
      %v970 = vld [vmem:[%s6 + $0x8] sm:$0xf]
      %v971 = vld [vmem:[%s6 + $0xc] sm:$0xf]
      %v972 = vld [vmem:[%s6 + $0x10] sm:$0xf]
      %v973 = vld [vmem:[%s6 + $0x14] sm:$0xf]
      %v974 = vld [vmem:[%s6 + $0x18] sm:$0xf]
      %v975 = vld [vmem:[%s6 + $0x1c] sm:$0xf]
      %v976 = vld [vmem:[%s6 + $0x20] sm:$0xf]
      %v977 = vld [vmem:[%s6 + $0x24] sm:$0xf]
      %v978 = vld [vmem:[%s6 + $0x28] sm:$0xf]
      %v979 = vld [vmem:[%s6 + $0x2c] sm:$0xf]
      %v980 = vld [vmem:[%s6 + $0x30] sm:$0xf]
      %v981 = vld [vmem:[%s6 + $0x34] sm:$0xf]
      %v982 = vld [vmem:[%s6 + $0x38] sm:$0xf]
      %v983 = vld [vmem:[%s6 + $0x3c] sm:$0xf]
      %s984 = scalar_lea.vmem [#allocation3], 1
      %v985 = vld [vmem:[%s984] ss:$2 sm:$0xff]
      %v986 = vpack.c.bf16 %v985, %v985
      %s987 = scalar_lea.vmem %s6, 64
      %v988 = vld [vmem:[%s987] sm:$0xf]
      %v989 = vld [vmem:[%s987 + $0x4] sm:$0xf]
      %v990 = vld [vmem:[%s987 + $0x8] sm:$0xf]
      %v991 = vld [vmem:[%s987 + $0xc] sm:$0xf]
      %v992 = vld [vmem:[%s987 + $0x10] sm:$0xf]
      %v993 = vld [vmem:[%s987 + $0x14] sm:$0xf]
      %v994 = vld [vmem:[%s987 + $0x18] sm:$0xf]
      %v995 = vld [vmem:[%s987 + $0x1c] sm:$0xf]
      %v996 = vld [vmem:[%s987 + $0x20] sm:$0xf]
      %v997 = vld [vmem:[%s987 + $0x24] sm:$0xf]
      %v998 = vld [vmem:[%s987 + $0x28] sm:$0xf]
      %v999 = vld [vmem:[%s987 + $0x2c] sm:$0xf]
      %v1000 = vld [vmem:[%s987 + $0x30] sm:$0xf]
      %v1001 = vld [vmem:[%s987 + $0x34] sm:$0xf]
      %v1002 = vld [vmem:[%s987 + $0x38] sm:$0xf]
      %v1003 = vld [vmem:[%s987 + $0x3c] sm:$0xf]
      %v1020 = vunpack.c.l.b16 %v988
      %v1021 = vunpack.c.l.b16 %v989
      %v1022 = vunpack.c.l.b16 %v990
      %v1023 = vunpack.c.l.b16 %v991
      %v1024 = vunpack.c.l.b16 %v992
      %v1025 = vunpack.c.l.b16 %v993
      %v1026 = vunpack.c.l.b16 %v994
      %v1027 = vunpack.c.l.b16 %v995
      %v1028 = vunpack.c.l.b16 %v996
      %v1029 = vunpack.c.l.b16 %v997
      %v1030 = vunpack.c.l.b16 %v998
      %v1031 = vunpack.c.l.b16 %v999
      %v1032 = vunpack.c.l.b16 %v1000
      %v1033 = vunpack.c.l.b16 %v1001
      %v1034 = vunpack.c.l.b16 %v1002
      %v1035 = vunpack.c.l.b16 %v1003
      %v1036 = vpack.c.b16 %v1021, %v1020
      %v1037 = vpack.c.b16 %v1023, %v1022
      %v1038 = vpack.c.b16 %v1025, %v1024
      %v1039 = vpack.c.b16 %v1027, %v1026
      %v1040 = vpack.c.b16 %v1029, %v1028
      %v1041 = vpack.c.b16 %v1031, %v1030
      %v1042 = vpack.c.b16 %v1033, %v1032
      %v1043 = vpack.c.b16 %v1035, %v1034
      %1052 = vmatprep.subr.bf16.mxu0 0
      %1053 = vmatpush1.bf16.msra.mxu0 %v1036
      %1054 = vmatprep.subr.bf16.mxu0 0
      %1055 = vmatpush1.bf16.msra.mxu0 %v1037
      %1056 = vmatprep.subr.bf16.mxu0 0
      %1057 = vmatpush1.bf16.msra.mxu0 %v1038
      %1058 = vmatprep.subr.bf16.mxu0 0
      %1059 = vmatpush1.bf16.msra.mxu0 %v1039
      %1060 = vmatprep.subr.bf16.mxu0 0
      %1061 = vmatpush1.bf16.msra.mxu0 %v1040
      %1062 = vmatprep.subr.bf16.mxu0 0
      %1063 = vmatpush1.bf16.msra.mxu0 %v1041
      %1064 = vmatprep.subr.bf16.mxu0 0
      %1065 = vmatpush1.bf16.msra.mxu0 %v1042
      %1066 = vmatprep.subr.bf16.mxu0 0
      %1067 = vmatpush1.bf16.msra.mxu0 %v1043
      %1068 = vmatprep.subr.bf16.mxu0 0
      %1069 = vmatpush1.bf16.msra.mxu0 0
      %1070 = vmatprep.subr.bf16.mxu0 0
      %1071 = vmatpush1.bf16.msra.mxu0 0
      %1072 = vmatprep.subr.bf16.mxu0 0
      %1073 = vmatpush1.bf16.msra.mxu0 0
      %1074 = vmatprep.subr.bf16.mxu0 0
      %1075 = vmatpush1.bf16.msra.mxu0 0
      %1076 = vmatprep.subr.bf16.mxu0 0
      %1077 = vmatpush1.bf16.msra.mxu0 0
      %1078 = vmatprep.subr.bf16.mxu0 0
      %1079 = vmatpush1.bf16.msra.mxu0 0
      %1080 = vmatprep.subr.bf16.mxu0 0
      %1081 = vmatpush1.bf16.msra.mxu0 0
      %1082 = vmatprep.subr.bf16.mxu0 0
      %1083 = vmatpush1.bf16.msra.mxu0 0
      %1084 = vmatprep.mubr.bf16.mxu0 0
      %1085 = vmatmul.mubr.bf16.gmra.mrb[0].mxu0 %v986
      %v1086 = vpop.f32.mrb[0].mxu0
      %v1087 = vadd.f32 0.0, %v1086
      %v1088 = vpop.f32.mrb[0].mxu0
      %v1089 = vpop.f32.mrb[0].mxu0
      %v1090 = vpop.f32.mrb[0].mxu0
      %1091 = vdwg.mxu0
      %v1108 = vunpack.c.l.b16 %v968
      %v1109 = vunpack.c.l.b16 %v969
      %v1110 = vunpack.c.l.b16 %v970
      %v1111 = vunpack.c.l.b16 %v971
      %v1112 = vunpack.c.l.b16 %v972
      %v1113 = vunpack.c.l.b16 %v973
      %v1114 = vunpack.c.l.b16 %v974
      %v1115 = vunpack.c.l.b16 %v975
      %v1116 = vunpack.c.l.b16 %v976
      %v1117 = vunpack.c.l.b16 %v977
      %v1118 = vunpack.c.l.b16 %v978
      %v1119 = vunpack.c.l.b16 %v979
      %v1120 = vunpack.c.l.b16 %v980
      %v1121 = vunpack.c.l.b16 %v981
      %v1122 = vunpack.c.l.b16 %v982
      %v1123 = vunpack.c.l.b16 %v983
      %v1124 = vpack.c.b16 %v1109, %v1108
      %v1125 = vpack.c.b16 %v1111, %v1110
      %v1126 = vpack.c.b16 %v1113, %v1112
      %v1127 = vpack.c.b16 %v1115, %v1114
      %v1128 = vpack.c.b16 %v1117, %v1116
      %v1129 = vpack.c.b16 %v1119, %v1118
      %v1130 = vpack.c.b16 %v1121, %v1120
      %v1131 = vpack.c.b16 %v1123, %v1122
      %1140 = vmatprep.subr.bf16.mxu0 0
      %1141 = vmatpush1.bf16.msra.mxu0 %v1124
      %1142 = vmatprep.subr.bf16.mxu0 0
      %1143 = vmatpush1.bf16.msra.mxu0 %v1125
      %1144 = vmatprep.subr.bf16.mxu0 0
      %1145 = vmatpush1.bf16.msra.mxu0 %v1126
      %1146 = vmatprep.subr.bf16.mxu0 0
      %1147 = vmatpush1.bf16.msra.mxu0 %v1127
      %1148 = vmatprep.subr.bf16.mxu0 0
      %1149 = vmatpush1.bf16.msra.mxu0 %v1128
      %1150 = vmatprep.subr.bf16.mxu0 0
      %1151 = vmatpush1.bf16.msra.mxu0 %v1129
      %1152 = vmatprep.subr.bf16.mxu0 0
      %1153 = vmatpush1.bf16.msra.mxu0 %v1130
      %1154 = vmatprep.subr.bf16.mxu0 0
      %1155 = vmatpush1.bf16.msra.mxu0 %v1131
      %1156 = vmatprep.subr.bf16.mxu0 0
      %1157 = vmatpush1.bf16.msra.mxu0 0
      %1158 = vmatprep.subr.bf16.mxu0 0
      %1159 = vmatpush1.bf16.msra.mxu0 0
      %1160 = vmatprep.subr.bf16.mxu0 0
      %1161 = vmatpush1.bf16.msra.mxu0 0
      %1162 = vmatprep.subr.bf16.mxu0 0
      %1163 = vmatpush1.bf16.msra.mxu0 0
      %1164 = vmatprep.subr.bf16.mxu0 0
      %1165 = vmatpush1.bf16.msra.mxu0 0
      %1166 = vmatprep.subr.bf16.mxu0 0
      %1167 = vmatpush1.bf16.msra.mxu0 0
      %1168 = vmatprep.subr.bf16.mxu0 0
      %1169 = vmatpush1.bf16.msra.mxu0 0
      %1170 = vmatprep.subr.bf16.mxu0 0
      %1171 = vmatpush1.bf16.msra.mxu0 0
      %1172 = vmatprep.mubr.bf16.mxu0 0
      %1173 = vmatmul.mubr.bf16.gmra.mrb[0].mxu0 %v967
      %v1174 = vpop.f32.mrb[0].mxu0
      %v1175 = vadd.f32 %v1087, %v1174
      %v1176 = vpop.f32.mrb[0].mxu0
      %v1177 = vpop.f32.mrb[0].mxu0
      %v1178 = vpop.f32.mrb[0].mxu0
      %1179 = vdwg.mxu0
      %s1180 = scalar_lea.vmem [#allocation3], 2
      %v1181 = vld [vmem:[%s1180] ss:$2 sm:$0xff]
      %v1182 = vpack.c.bf16 %v1181, %v1181
      %s1183 = scalar_lea.vmem %s6, 128
      %v1184 = vld [vmem:[%s1183] sm:$0xf]
      %v1185 = vld [vmem:[%s1183 + $0x4] sm:$0xf]
      %v1186 = vld [vmem:[%s1183 + $0x8] sm:$0xf]
      %v1187 = vld [vmem:[%s1183 + $0xc] sm:$0xf]
      %v1188 = vld [vmem:[%s1183 + $0x10] sm:$0xf]
      %v1189 = vld [vmem:[%s1183 + $0x14] sm:$0xf]
      %v1190 = vld [vmem:[%s1183 + $0x18] sm:$0xf]
      %v1191 = vld [vmem:[%s1183 + $0x1c] sm:$0xf]
      %v1192 = vld [vmem:[%s1183 + $0x20] sm:$0xf]
      %v1193 = vld [vmem:[%s1183 + $0x24] sm:$0xf]
      %v1194 = vld [vmem:[%s1183 + $0x28] sm:$0xf]
      %v1195 = vld [vmem:[%s1183 + $0x2c] sm:$0xf]
      %v1196 = vld [vmem:[%s1183 + $0x30] sm:$0xf]
      %v1197 = vld [vmem:[%s1183 + $0x34] sm:$0xf]
      %v1198 = vld [vmem:[%s1183 + $0x38] sm:$0xf]
      %v1199 = vld [vmem:[%s1183 + $0x3c] sm:$0xf]
      %v1216 = vunpack.c.l.b16 %v1184
      %v1217 = vunpack.c.l.b16 %v1185
      %v1218 = vunpack.c.l.b16 %v1186
      %v1219 = vunpack.c.l.b16 %v1187
      %v1220 = vunpack.c.l.b16 %v1188
      %v1221 = vunpack.c.l.b16 %v1189
      %v1222 = vunpack.c.l.b16 %v1190
      %v1223 = vunpack.c.l.b16 %v1191
      %v1224 = vunpack.c.l.b16 %v1192
      %v1225 = vunpack.c.l.b16 %v1193
      %v1226 = vunpack.c.l.b16 %v1194
      %v1227 = vunpack.c.l.b16 %v1195
      %v1228 = vunpack.c.l.b16 %v1196
      %v1229 = vunpack.c.l.b16 %v1197
      %v1230 = vunpack.c.l.b16 %v1198
      %v1231 = vunpack.c.l.b16 %v1199
      %v1232 = vpack.c.b16 %v1217, %v1216
      %v1233 = vpack.c.b16 %v1219, %v1218
      %v1234 = vpack.c.b16 %v1221, %v1220
      %v1235 = vpack.c.b16 %v1223, %v1222
      %v1236 = vpack.c.b16 %v1225, %v1224
      %v1237 = vpack.c.b16 %v1227, %v1226
      %v1238 = vpack.c.b16 %v1229, %v1228
      %v1239 = vpack.c.b16 %v1231, %v1230
      %1248 = vmatprep.subr.bf16.mxu0 0
      %1249 = vmatpush1.bf16.msra.mxu0 %v1232
      %1250 = vmatprep.subr.bf16.mxu0 0
      %1251 = vmatpush1.bf16.msra.mxu0 %v1233
      %1252 = vmatprep.subr.bf16.mxu0 0
      %1253 = vmatpush1.bf16.msra.mxu0 %v1234
      %1254 = vmatprep.subr.bf16.mxu0 0
      %1255 = vmatpush1.bf16.msra.mxu0 %v1235
      %1256 = vmatprep.subr.bf16.mxu0 0
      %1257 = vmatpush1.bf16.msra.mxu0 %v1236
      %1258 = vmatprep.subr.bf16.mxu0 0
      %1259 = vmatpush1.bf16.msra.mxu0 %v1237
      %1260 = vmatprep.subr.bf16.mxu0 0
      %1261 = vmatpush1.bf16.msra.mxu0 %v1238
      %1262 = vmatprep.subr.bf16.mxu0 0
      %1263 = vmatpush1.bf16.msra.mxu0 %v1239
      %1264 = vmatprep.subr.bf16.mxu0 0
      %1265 = vmatpush1.bf16.msra.mxu0 0
      %1266 = vmatprep.subr.bf16.mxu0 0
      %1267 = vmatpush1.bf16.msra.mxu0 0
      %1268 = vmatprep.subr.bf16.mxu0 0
      %1269 = vmatpush1.bf16.msra.mxu0 0
      %1270 = vmatprep.subr.bf16.mxu0 0
      %1271 = vmatpush1.bf16.msra.mxu0 0
      %1272 = vmatprep.subr.bf16.mxu0 0
      %1273 = vmatpush1.bf16.msra.mxu0 0
      %1274 = vmatprep.subr.bf16.mxu0 0
      %1275 = vmatpush1.bf16.msra.mxu0 0
      %1276 = vmatprep.subr.bf16.mxu0 0
      %1277 = vmatpush1.bf16.msra.mxu0 0
      %1278 = vmatprep.subr.bf16.mxu0 0
      %1279 = vmatpush1.bf16.msra.mxu0 0
      %1280 = vmatprep.mubr.bf16.mxu0 0
      %1281 = vmatmul.mubr.bf16.gmra.mrb[0].mxu0 %v1182
      %v1282 = vpop.f32.mrb[0].mxu0
      %v1283 = vadd.f32 0.0, %v1282
      %v1284 = vpop.f32.mrb[0].mxu0
      %v1285 = vpop.f32.mrb[0].mxu0
      %v1286 = vpop.f32.mrb[0].mxu0
      %1287 = vdwg.mxu0
      %v1288 = vadd.f32 %v1175, %v1283
      %v1289 = vld [vmem:[%s7] sm:$0x1]
      %v1291 = vlaneseq
      %v1292 = vshrl.u32 %v1291, 7
      %v1293 = vsub.s32 0, %v1292
      %v1294 = vrot.slane %v1289, %v1293
      %v1296 = vadd.f32 %v1288, %v1294
      %vm1297 = vcmp.ge.f32.partialorder %v1296, 0.0
      %v1298 = vmul.f32 %v618, %v1296
      %v1299 = vsel %vm1297, %v1296, %v1298
      %1300 = vst.msk [vmem:[%s344] sm:$0xff] %vm410, %v1299
      %p1301 = scmp.lt.s32.totalorder %s22, 1
      %s1302 = scalar_select %p1301, %s22, 1
      %s1303 = smul.addr %s1302, 2
      %s1304 = smul.addr %s1303, 8
      %s1305 = scalar_lea.vmem %s8, %s1304
      %p1306 = scmp.lt.s32.totalorder %s22, 1
      %s1307 = scalar_select %p1306, %s22, 1
      %s1308 = smul.addr %s1307, 8
      %s1309 = scalar_lea.vmem %s9, %s1308
      // Predicated region
      $region53: #{encoding_block_forward.1} parent=51 // pred_check
        %p1310 = pneg %p213
      $region54: #{encoding_block_forward.1} parent=51 // pred_check_branch
        %1312 = sbr.rel (%p1310) target = $region56
      $region55: #{encoding_block_forward.1} parent=51 // pred_region
        _
      $region56: #{encoding_block_forward.1} parent=51 // pred_fallthru
        _
      // Predicated region
      $region57: #{encoding_block_forward.1} parent=51 // pred_check
        %p1313 = pneg %p239
      $region58: #{encoding_block_forward.1} parent=51 // pred_check_branch
        %1315 = sbr.rel (%p1313) target = $region60
      $region59: #{encoding_block_forward.1} parent=51 // pred_region
        _
      $region60: #{encoding_block_forward.1} parent=51 // pred_fallthru
        _
    $region52: #{encoding_block_forward.1} parent=5 // pred_fallthru
      _
    %p1316 = scmp.le.s32.totalorder 2, %s17
    // Predicated region
    $region61: #{encoding_block_forward.1} parent=5 // pred_check
      %p1317 = pneg %p1316
    $region62: #{encoding_block_forward.1} parent=5 // pred_check_branch
      %1319 = sbr.rel (%p1317) target = $region64
    $region63: #{encoding_block_forward.1} parent=5 // pred_region
      %s1320 = ssub.s32 %s17, 2
      // Predicated region
      $region65: #{encoding_block_forward.1} parent=63 // pred_check
        %p1321 = pneg %p219
      $region66: #{encoding_block_forward.1} parent=63 // pred_check_branch
        %1323 = sbr.rel (%p1321) target = $region68
      $region67: #{encoding_block_forward.1} parent=63 // pred_region
        %p1324 = scmp.lt.s32.totalorder %s23, 1
        %s1325 = scalar_select %p1324, %s23, 1
        %s1326 = smul.addr %s1325, 2
        %s1327 = smul.addr %s1326, 8
        %s1328 = scalar_lea.vmem %s8, %s1327
      $region68: #{encoding_block_forward.1} parent=63 // pred_fallthru
        _
      // Predicated region
      $region69: #{encoding_block_forward.1} parent=63 // pred_check
        %p1329 = pneg %p245
      $region70: #{encoding_block_forward.1} parent=63 // pred_check_branch
        %1331 = sbr.rel (%p1329) target = $region72
      $region71: #{encoding_block_forward.1} parent=63 // pred_region
        %p1332 = scmp.lt.s32.totalorder %s23, 1
        %s1333 = scalar_select %p1332, %s23, 1
        %s1334 = smul.addr %s1333, 8
        %s1335 = scalar_lea.vmem %s9, %s1334
      $region72: #{encoding_block_forward.1} parent=63 // pred_fallthru
        _
    $region64: #{encoding_block_forward.1} parent=5 // pred_fallthru
      _
  $region6: #{encoding_block_forward.1} parent=0 // loop_footer
    %s21 = sadd.s32 1, %s17
  $region7: #{encoding_block_forward.1} parent=0 // loop_footer_branch
    %16 = sbr.rel target = $region3
  $region8: #{encoding_block_forward.1} parent=0 // loop_exit
    _

</llo_original>
